<compile_context>
chip_gen: v5e
topology: v5e:2x2
jax: 0.10.0
libtpu: 0.0.40
codegen_flags: <defaults>
</compile_context>

<pallas_src>
import functools

import jax
import jax.numpy as jnp
import numpy as np
from jax.experimental import pallas as pl
from jax.experimental.pallas import tpu as pltpu

# ---------------- small synthetic model config ----------------
N_MEL = 16          # n_mel_channels
D_MODEL = 32        # d_melencoder (encoder_hidden)
N_SPECTRAL = 2      # spectral_layer
N_TEMPORAL = 2      # temporal_layer
N_SLF_ATTN = 1      # slf_attn_layer
N_HEAD = 2          # slf_attn_head
D_K = D_MODEL // N_HEAD
D_V = D_MODEL // N_HEAD
KERNEL_SIZE = 5     # conv_kernel_size
PAD = (KERNEL_SIZE - 1) // 2
LN_EPS = 1e-5
MASK_NEG = -1e9     # finite "minus infinity" for the attention mask

BATCH = 2
SEQ = 16


def _mish(x):
    return x * jnp.tanh(jax.nn.softplus(x))


# ----------------------------- kernel -----------------------------
def mel_style_encoder_kernel(
    mel_ref,      # (BB, T, N_MEL)
    mask_ref,     # (BB, 1, T) float32, 1.0 => padded key position
    fc1_ref,      # (N_MEL, D)
    spec_ref,     # (N_SPECTRAL, D, D)
    convw_ref,    # (N_TEMPORAL, K*D, 2D)   taps pre-flattened in the wrapper
    convb_ref,    # (N_TEMPORAL, 1, 2D)
    wq_ref,       # (N_SLF_ATTN, D, H*D_K)
    wk_ref,       # (N_SLF_ATTN, D, H*D_K)
    wv_ref,       # (N_SLF_ATTN, D, H*D_V)
    wo_ref,       # (N_SLF_ATTN, H*D_V, D)
    lng_ref,      # (N_SLF_ATTN, 1, D)
    lnb_ref,      # (N_SLF_ATTN, 1, D)
    fc2_ref,      # (D, D)
    out_ref,      # (BB, 1, D)
):
    BB, T, _ = mel_ref.shape
    R = BB * T                                  # activation rows handled this step

    x = mel_ref[...].reshape(R, N_MEL)          # (R, N_MEL), rows = (batch, time)
    key_bad = mask_ref[...] > 0.5               # (BB, 1, T), hoisted once

    # ---- fc_1 (bias-free linear) ----
    h = jnp.dot(x, fc1_ref[...], preferred_element_type=jnp.float32)        # (R, D)

    # ---- spectral stack: Linear + Mish ----
    for i in range(N_SPECTRAL):
        h = _mish(jnp.dot(h, spec_ref[i], preferred_element_type=jnp.float32))

    # ---- temporal stack: fused im2col Conv1D(D->2D, same pad) + Mish + GLU + residual ----
    # per-row time index (row r corresponds to batch r//T, time r%T)
    tpos = jax.lax.broadcasted_iota(jnp.int32, (R, D_MODEL), 0) % T
    for i in range(N_TEMPORAL):
        residual = h
        windows = []
        for k in range(KERNEL_SIZE):
            off = k - PAD                        # window_k[t] = h[t + off], zero padded
            if off == 0:
                shifted = h
            else:
                # circular sublane roll; wrapped / out-of-sequence rows are masked below
                shifted = pltpu.roll(h, shift=(-off) % R, axis=0)
            valid = jnp.logical_and(tpos + off >= 0, tpos + off < T)
            windows.append(jnp.where(valid, shifted, 0.0))
        im2col = jnp.concatenate(windows, axis=-1)                           # (R, K*D)
        y = jnp.dot(im2col, convw_ref[i], preferred_element_type=jnp.float32)
        y = _mish(y + convb_ref[i])                                          # (R, 2D)
        h = residual + y[:, :D_MODEL] * jax.nn.sigmoid(y[:, D_MODEL:])       # GLU(dim=-1)

    # ---- self-attention stack ----
    inv_sqrt_dk = 1.0 / float(np.sqrt(D_K))
    for i in range(N_SLF_ATTN):
        residual = h
        # fused projections: one dot per Q/K/V over all heads
        q = jnp.dot(h, wq_ref[i], preferred_element_type=jnp.float32)        # (R, H*D_K)
        k = jnp.dot(h, wk_ref[i], preferred_element_type=jnp.float32)
        v = jnp.dot(h, wv_ref[i], preferred_element_type=jnp.float32)
        q3 = q.reshape(BB, T, N_HEAD * D_K)
        k3 = k.reshape(BB, T, N_HEAD * D_K)
        v3 = v.reshape(BB, T, N_HEAD * D_V)

        ctxs = []
        for hh in range(N_HEAD):
            qh = q3[..., hh * D_K:(hh + 1) * D_K]                            # (BB, T, D_K)
            kh = k3[..., hh * D_K:(hh + 1) * D_K]
            vh = v3[..., hh * D_V:(hh + 1) * D_V]
            s = jnp.einsum("bqd,bkd->bqk", qh, kh,
                           preferred_element_type=jnp.float32) * inv_sqrt_dk  # (BB, T, T)
            s = jnp.where(key_bad, MASK_NEG, s)
            s = s - jnp.max(s, axis=-1, keepdims=True)
            e = jnp.exp(s)
            p = e * pl.reciprocal(jnp.sum(e, axis=-1, keepdims=True), approx=True)
            ctxs.append(jnp.einsum("bqk,bkd->bqd", p, vh,
                                   preferred_element_type=jnp.float32))       # (BB, T, D_V)
        ctx = jnp.concatenate(ctxs, axis=-1).reshape(R, N_HEAD * D_V)
        # fused output projection on the concatenated heads
        o = jnp.dot(ctx, wo_ref[i], preferred_element_type=jnp.float32)       # (R, D)
        # post LayerNorm (layer_norm=True); residual added outside the MHA as in forward()
        mu = jnp.mean(o, axis=-1, keepdims=True)
        var = jnp.mean(jnp.square(o - mu), axis=-1, keepdims=True)
        o = (o - mu) * jax.lax.rsqrt(var + LN_EPS)
        o = o * lng_ref[i] + lnb_ref[i]
        h = residual + o

    # ---- fc_2 + temporal mean (keepdim) ----
    h = jnp.dot(h, fc2_ref[...], preferred_element_type=jnp.float32)          # (R, D)
    out_ref[...] = jnp.mean(h.reshape(BB, T, D_MODEL), axis=1, keepdims=True)


# ----------------------------- wrapper -----------------------------
def _pick_batch_block(batch):
    """v7x has two TensorCores per chip -> keep one batch element per grid step so
    dimension_semantics=('parallel',) spreads them across cores; single-TC chips
    (v5e / v6e) fold the whole batch into one step to amortize grid-step overhead."""
    try:
        kind = jax.devices()[0].device_kind.lower()
    except Exception:
        kind = ""
    if "7" in kind:
        return 1
    return batch


def _full_spec(arr):
    nd = arr.ndim
    return pl.BlockSpec(arr.shape, lambda b, _nd=nd: (0,) * _nd)


@functools.partial(jax.jit, static_argnames=("bb",))
def _mel_style_encoder_call(mel, mask_f, weights, *, bb):
    B, T, M = mel.shape
    in_specs = [
        pl.BlockSpec((bb, T, M), lambda b: (b, 0, 0)),
        pl.BlockSpec((bb, 1, T), lambda b: (b, 0, 0)),
    ] + [_full_spec(w) for w in weights]

    return pl.pallas_call(
        mel_style_encoder_kernel,
        out_shape=jax.ShapeDtypeStruct((B, 1, D_MODEL), jnp.float32),
        grid_spec=pltpu.PrefetchScalarGridSpec(
            num_scalar_prefetch=0,
            grid=(B // bb,),
            in_specs=in_specs,
            out_specs=pl.BlockSpec((bb, 1, D_MODEL), lambda b: (b, 0, 0)),
        ),
        compiler_params=pltpu.CompilerParams(dimension_semantics=("parallel",)),
    )(mel, mask_f, *weights)


def mel_style_encoder(mel, mask_bool, params):
    B = mel.shape[0]
    bb = _pick_batch_block(B)
    mask_f = mask_bool.astype(jnp.float32)[:, None, :]            # (B, 1, T)
    weights = (
        params["fc1_w"],
        params["spec_w"],
        # flatten conv taps once in the wrapper: (L, K, D, 2D) -> (L, K*D, 2D)
        params["conv_w"].reshape(N_TEMPORAL, KERNEL_SIZE * D_MODEL, 2 * D_MODEL),
        params["conv_b"],
        params["wq"], params["wk"], params["wv"], params["wo"],
        params["ln_g"], params["ln_b"],
        params["fc2_w"],
    )
    return _mel_style_encoder_call(mel, mask_f, weights, bb=bb)


# ----------------------- pure-JAX reference -----------------------
def mel_style_encoder_ref(mel, mask_bool, p):
    B, T, _ = mel.shape
    h = mel @ p["fc1_w"]
    for i in range(N_SPECTRAL):
        h = _mish(h @ p["spec_w"][i])
    for i in range(N_TEMPORAL):
        res = h
        hp_ = jnp.pad(h, ((0, 0), (PAD, PAD), (0, 0)))
        y = jnp.zeros((B, T, 2 * D_MODEL), jnp.float32) + p["conv_b"][i]
        for t in range(KERNEL_SIZE):
            y = y + jnp.einsum("btd,de->bte", hp_[:, t:t + T], p["conv_w"][i, t])
        y = _mish(y)
        h = res + y[..., :D_MODEL] * jax.nn.sigmoid(y[..., D_MODEL:])
    for i in range(N_SLF_ATTN):
        res = h
        q = h @ p["wq"][i]
        k = h @ p["wk"][i]
        v = h @ p["wv"][i]

        def split(x, dh):
            return x.reshape(B, T, N_HEAD, dh).transpose(0, 2, 1, 3)

        qh, kh, vh = split(q, D_K), split(k, D_K), split(v, D_V)
        attn = jnp.einsum("bhqd,bhkd->bhqk", qh, kh) / np.sqrt(D_K)
        attn = jnp.where(mask_bool[:, None, None, :], MASK_NEG, attn)
        attn = jax.nn.softmax(attn, axis=-1)
        ctx = jnp.einsum("bhqk,bhkd->bhqd", attn, vh)
        ctx = ctx.transpose(0, 2, 1, 3).reshape(B, T, N_HEAD * D_V)
        o = ctx @ p["wo"][i]
        mu = o.mean(-1, keepdims=True)
        var = ((o - mu) ** 2).mean(-1, keepdims=True)
        o = (o - mu) / jnp.sqrt(var + LN_EPS)
        o = o * p["ln_g"][i] + p["ln_b"][i]
        h = res + o
    h = h @ p["fc2_w"]
    return h.mean(axis=1, keepdims=True)


# --------------------------- param init ---------------------------
def init_params(key):
    ks = jax.random.split(key, 9)

    def w(k, shape, fan_in):
        return (jax.random.normal(k, shape, jnp.float32) / np.sqrt(fan_in)).astype(jnp.float32)

    return dict(
        fc1_w=w(ks[0], (N_MEL, D_MODEL), N_MEL),
        spec_w=w(ks[1], (N_SPECTRAL, D_MODEL, D_MODEL), D_MODEL),
        conv_w=w(ks[2], (N_TEMPORAL, KERNEL_SIZE, D_MODEL, 2 * D_MODEL),
                 D_MODEL * KERNEL_SIZE),
        conv_b=(0.01 * jax.random.normal(ks[3], (N_TEMPORAL, 1, 2 * D_MODEL))
                ).astype(jnp.float32),
        wq=w(ks[4], (N_SLF_ATTN, D_MODEL, N_HEAD * D_K), D_MODEL),
        wk=w(ks[5], (N_SLF_ATTN, D_MODEL, N_HEAD * D_K), D_MODEL),
        wv=w(ks[6], (N_SLF_ATTN, D_MODEL, N_HEAD * D_V), D_MODEL),
        wo=w(ks[7], (N_SLF_ATTN, N_HEAD * D_V, D_MODEL), N_HEAD * D_V),
        ln_g=jnp.ones((N_SLF_ATTN, 1, D_MODEL), jnp.float32),
        ln_b=jnp.zeros((N_SLF_ATTN, 1, D_MODEL), jnp.float32),
        fc2_w=w(ks[8], (D_MODEL, D_MODEL), D_MODEL),
    )


if __name__ == "__main__":
    key = jax.random.PRNGKey(0)
    kp, km = jax.random.split(key)
    params = init_params(kp)

    mel = jax.random.normal(km, (BATCH, SEQ, N_MEL), jnp.float32)
    lengths = jnp.array([SEQ, 12], dtype=jnp.int32)
    mask = jnp.arange(SEQ)[None, :] >= lengths[:, None]   # (B, T) True = padded

    out = mel_style_encoder(mel, mask, params)
    out = jax.block_until_ready(out)

    assert out.shape == (BATCH, 1, D_MODEL)
    assert bool(jnp.all(jnp.isfinite(out)))

    ref = mel_style_encoder_ref(mel, mask, params)
    np.testing.assert_allclose(np.asarray(out), np.asarray(ref), rtol=2e-2, atol=2e-2)

    print("KERNEL_OK")
</pallas_src>

<mosaic_0001>
module attributes {stable_mosaic.version = 11 : i64} {
  func.func @mel_style_encoder_kernel(%arg0: i32, %arg1: memref<2x16x16xf32, #tpu.memory_space<vmem>>, %arg2: memref<2x1x16xf32, #tpu.memory_space<vmem>>, %arg3: memref<16x32xf32, #tpu.memory_space<vmem>>, %arg4: memref<2x32x32xf32, #tpu.memory_space<vmem>>, %arg5: memref<2x160x64xf32, #tpu.memory_space<vmem>>, %arg6: memref<2x1x64xf32, #tpu.memory_space<vmem>>, %arg7: memref<1x32x32xf32, #tpu.memory_space<vmem>>, %arg8: memref<1x32x32xf32, #tpu.memory_space<vmem>>, %arg9: memref<1x32x32xf32, #tpu.memory_space<vmem>>, %arg10: memref<1x32x32xf32, #tpu.memory_space<vmem>>, %arg11: memref<1x1x32xf32, #tpu.memory_space<vmem>>, %arg12: memref<1x1x32xf32, #tpu.memory_space<vmem>>, %arg13: memref<32x32xf32, #tpu.memory_space<vmem>>, %arg14: memref<2x1x32xf32, #tpu.memory_space<vmem>>) attributes {dimension_semantics = [#tpu.dimension_semantics<parallel>], iteration_bounds = array<i64: 1>, scalar_prefetch = 0 : i64, scratch_operands = 0 : i64, tpu.core_type = #tpu.core_type<tc>, window_params = [{transform_indices = @transform_0, window_bounds = array<i64: 2, 16, 16>}, {transform_indices = @transform_1, window_bounds = array<i64: 2, 1, 16>}, {pipeline_mode = #tpu.pipeline_mode<synchronous>, transform_indices = @transform_2, window_bounds = array<i64: 16, 32>}, {pipeline_mode = #tpu.pipeline_mode<synchronous>, transform_indices = @transform_3, window_bounds = array<i64: 2, 32, 32>}, {pipeline_mode = #tpu.pipeline_mode<synchronous>, transform_indices = @transform_4, window_bounds = array<i64: 2, 160, 64>}, {pipeline_mode = #tpu.pipeline_mode<synchronous>, transform_indices = @transform_5, window_bounds = array<i64: 2, 1, 64>}, {pipeline_mode = #tpu.pipeline_mode<synchronous>, transform_indices = @transform_6, window_bounds = array<i64: 1, 32, 32>}, {pipeline_mode = #tpu.pipeline_mode<synchronous>, transform_indices = @transform_7, window_bounds = array<i64: 1, 32, 32>}, {pipeline_mode = #tpu.pipeline_mode<synchronous>, transform_indices = @transform_8, window_bounds = array<i64: 1, 32, 32>}, {pipeline_mode = #tpu.pipeline_mode<synchronous>, transform_indices = @transform_9, window_bounds = array<i64: 1, 32, 32>}, {pipeline_mode = #tpu.pipeline_mode<synchronous>, transform_indices = @transform_10, window_bounds = array<i64: 1, 1, 32>}, {pipeline_mode = #tpu.pipeline_mode<synchronous>, transform_indices = @transform_11, window_bounds = array<i64: 1, 1, 32>}, {pipeline_mode = #tpu.pipeline_mode<synchronous>, transform_indices = @transform_12, window_bounds = array<i64: 32, 32>}, {transform_indices = @transform_13, window_bounds = array<i64: 2, 1, 32>}]} {
    %c0 = arith.constant 0 : index
    %c0_0 = arith.constant 0 : index
    %c0_1 = arith.constant 0 : index
    %0 = vector.load %arg1[%c0, %c0_0, %c0_1] : memref<2x16x16xf32, #tpu.memory_space<vmem>>, vector<2x16x16xf32>
    %1 = vector.shape_cast %0 : vector<2x16x16xf32> to vector<32x16xf32>
    %c0_2 = arith.constant 0 : index
    %c0_3 = arith.constant 0 : index
    %c0_4 = arith.constant 0 : index
    %2 = vector.load %arg2[%c0_2, %c0_3, %c0_4] : memref<2x1x16xf32, #tpu.memory_space<vmem>>, vector<2x1x16xf32>
    %cst = arith.constant 5.000000e-01 : f32
    %3 = vector.broadcast %cst : f32 to vector<2x1x16xf32>
    %4 = arith.cmpf ogt, %2, %3 : vector<2x1x16xf32>
    %c0_5 = arith.constant 0 : index
    %c0_6 = arith.constant 0 : index
    %5 = vector.load %arg3[%c0_5, %c0_6] : memref<16x32xf32, #tpu.memory_space<vmem>>, vector<16x32xf32>
    %cst_7 = arith.constant dense<0.000000e+00> : vector<32x32xf32>
    %6 = tpu.matmul %1, %5, %cst_7 {dimension_numbers = #tpu.dot_dimension_numbers<[1], [0], [0], [1], [0, 0, 1, 1], [], []>} : vector<32x16xf32>, vector<16x32xf32>, vector<32x32xf32> -> vector<32x32xf32>
    %c0_8 = arith.constant 0 : index
    %c0_9 = arith.constant 0 : index
    %c0_10 = arith.constant 0 : index
    %7 = vector.load %arg4[%c0_8, %c0_9, %c0_10] : memref<2x32x32xf32, #tpu.memory_space<vmem>>, vector<1x32x32xf32>
    %8 = vector.shape_cast %7 : vector<1x32x32xf32> to vector<32x32xf32>
    %cst_11 = arith.constant dense<0.000000e+00> : vector<32x32xf32>
    %9 = tpu.matmul %6, %8, %cst_11 {dimension_numbers = #tpu.dot_dimension_numbers<[1], [0], [0], [1], [0, 0, 1, 1], [], []>} : vector<32x32xf32>, vector<32x32xf32>, vector<32x32xf32> -> vector<32x32xf32>
    %cst_12 = arith.constant 0.000000e+00 : f32
    %10 = vector.broadcast %cst_12 : f32 to vector<32x32xf32>
    %11 = arith.maximumf %9, %10 : vector<32x32xf32>
    %12 = vector.broadcast %cst_12 : f32 to vector<32x32xf32>
    %13 = arith.subf %9, %12 : vector<32x32xf32>
    %14 = arith.cmpf one, %13, %13 : vector<32x32xf32>
    %15 = vector.broadcast %cst_12 : f32 to vector<32x32xf32>
    %16 = arith.addf %9, %15 : vector<32x32xf32>
    %17 = math.absf %13 : vector<32x32xf32>
    %cst_13 = arith.constant 0.000000e+00 : f32
    %18 = vector.broadcast %cst_13 : f32 to vector<32x32xf32>
    %19 = arith.subf %18, %17 : vector<32x32xf32>
    %20 = math.exp %19 : vector<32x32xf32>
    %21 = math.log1p %20 : vector<32x32xf32>
    %22 = arith.addf %11, %21 : vector<32x32xf32>
    %23 = arith.select %14, %16, %22 : vector<32x32xi1>, vector<32x32xf32>
    %24 = math.tanh %23 : vector<32x32xf32>
    %25 = arith.mulf %9, %24 : vector<32x32xf32>
    %c1 = arith.constant 1 : index
    %c0_14 = arith.constant 0 : index
    %c0_15 = arith.constant 0 : index
    %26 = vector.load %arg4[%c1, %c0_14, %c0_15] : memref<2x32x32xf32, #tpu.memory_space<vmem>>, vector<1x32x32xf32>
    %27 = vector.shape_cast %26 : vector<1x32x32xf32> to vector<32x32xf32>
    %cst_16 = arith.constant dense<0.000000e+00> : vector<32x32xf32>
    %28 = tpu.matmul %25, %27, %cst_16 {dimension_numbers = #tpu.dot_dimension_numbers<[1], [0], [0], [1], [0, 0, 1, 1], [], []>} : vector<32x32xf32>, vector<32x32xf32>, vector<32x32xf32> -> vector<32x32xf32>
    %cst_17 = arith.constant 0.000000e+00 : f32
    %29 = vector.broadcast %cst_17 : f32 to vector<32x32xf32>
    %30 = arith.maximumf %28, %29 : vector<32x32xf32>
    %31 = vector.broadcast %cst_17 : f32 to vector<32x32xf32>
    %32 = arith.subf %28, %31 : vector<32x32xf32>
    %33 = arith.cmpf one, %32, %32 : vector<32x32xf32>
    %34 = vector.broadcast %cst_17 : f32 to vector<32x32xf32>
    %35 = arith.addf %28, %34 : vector<32x32xf32>
    %36 = math.absf %32 : vector<32x32xf32>
    %cst_18 = arith.constant 0.000000e+00 : f32
    %37 = vector.broadcast %cst_18 : f32 to vector<32x32xf32>
    %38 = arith.subf %37, %36 : vector<32x32xf32>
    %39 = math.exp %38 : vector<32x32xf32>
    %40 = math.log1p %39 : vector<32x32xf32>
    %41 = arith.addf %30, %40 : vector<32x32xf32>
    %42 = arith.select %33, %35, %41 : vector<32x32xi1>, vector<32x32xf32>
    %43 = math.tanh %42 : vector<32x32xf32>
    %44 = arith.mulf %28, %43 : vector<32x32xf32>
    %45 = tpu.iota {dimensions = array<i32: 0>} : vector<32x32xi32>
    %c16_i32 = arith.constant 16 : i32
    %c0_i32 = arith.constant 0 : i32
    %46 = arith.cmpi eq, %c16_i32, %c0_i32 : i32
    %c1_i32 = arith.constant 1 : i32
    %47 = arith.select %46, %c1_i32, %c16_i32 : i32
    %48 = vector.broadcast %47 : i32 to vector<32x32xi32>
    %49 = arith.remsi %45, %48 : vector<32x32xi32>
    %c0_i32_19 = arith.constant 0 : i32
    %50 = vector.broadcast %c0_i32_19 : i32 to vector<32x32xi32>
    %51 = arith.cmpi ne, %49, %50 : vector<32x32xi32>
    %c0_i32_20 = arith.constant 0 : i32
    %52 = vector.broadcast %c0_i32_20 : i32 to vector<32x32xi32>
    %53 = arith.cmpi slt, %49, %52 : vector<32x32xi32>
    %c0_i32_21 = arith.constant 0 : i32
    %54 = arith.cmpi slt, %47, %c0_i32_21 : i32
    %55 = vector.broadcast %54 : i1 to vector<32x32xi1>
    %56 = vector.broadcast %55 : vector<32x32xi1> to vector<32x32xi1>
    %57 = arith.xori %53, %56 : vector<32x32xi1>
    %58 = arith.andi %57, %51 : vector<32x32xi1>
    %59 = vector.broadcast %47 : i32 to vector<32x32xi32>
    %60 = arith.addi %49, %59 : vector<32x32xi32>
    %61 = arith.select %58, %60, %49 : vector<32x32xi1>, vector<32x32xi32>
    %c2_i32 = arith.constant 2 : i32
    %62 = tpu.dynamic_rotate %44 by %c2_i32 dim 0 : vector<32x32xf32>, i32 -> vector<32x32xf32>
    %c-2_i32 = arith.constant -2 : i32
    %63 = vector.broadcast %c-2_i32 : i32 to vector<32x32xi32>
    %64 = arith.addi %61, %63 : vector<32x32xi32>
    %c0_i32_22 = arith.constant 0 : i32
    %65 = vector.broadcast %c0_i32_22 : i32 to vector<32x32xi32>
    %66 = arith.cmpi sge, %64, %65 : vector<32x32xi32>
    %c-2_i32_23 = arith.constant -2 : i32
    %67 = vector.broadcast %c-2_i32_23 : i32 to vector<32x32xi32>
    %68 = arith.addi %61, %67 : vector<32x32xi32>
    %c16_i32_24 = arith.constant 16 : i32
    %69 = vector.broadcast %c16_i32_24 : i32 to vector<32x32xi32>
    %70 = arith.cmpi slt, %68, %69 : vector<32x32xi32>
    %71 = arith.andi %66, %70 : vector<32x32xi1>
    %cst_25 = arith.constant 0.000000e+00 : f32
    %72 = vector.broadcast %cst_25 : f32 to vector<32x32xf32>
    %73 = arith.select %71, %62, %72 : vector<32x32xi1>, vector<32x32xf32>
    %c1_i32_26 = arith.constant 1 : i32
    %74 = tpu.dynamic_rotate %44 by %c1_i32_26 dim 0 : vector<32x32xf32>, i32 -> vector<32x32xf32>
    %c-1_i32 = arith.constant -1 : i32
    %75 = vector.broadcast %c-1_i32 : i32 to vector<32x32xi32>
    %76 = arith.addi %61, %75 : vector<32x32xi32>
    %c0_i32_27 = arith.constant 0 : i32
    %77 = vector.broadcast %c0_i32_27 : i32 to vector<32x32xi32>
    %78 = arith.cmpi sge, %76, %77 : vector<32x32xi32>
    %c-1_i32_28 = arith.constant -1 : i32
    %79 = vector.broadcast %c-1_i32_28 : i32 to vector<32x32xi32>
    %80 = arith.addi %61, %79 : vector<32x32xi32>
    %c16_i32_29 = arith.constant 16 : i32
    %81 = vector.broadcast %c16_i32_29 : i32 to vector<32x32xi32>
    %82 = arith.cmpi slt, %80, %81 : vector<32x32xi32>
    %83 = arith.andi %78, %82 : vector<32x32xi1>
    %cst_30 = arith.constant 0.000000e+00 : f32
    %84 = vector.broadcast %cst_30 : f32 to vector<32x32xf32>
    %85 = arith.select %83, %74, %84 : vector<32x32xi1>, vector<32x32xf32>
    %c0_i32_31 = arith.constant 0 : i32
    %86 = vector.broadcast %c0_i32_31 : i32 to vector<32x32xi32>
    %87 = arith.addi %61, %86 : vector<32x32xi32>
    %c0_i32_32 = arith.constant 0 : i32
    %88 = vector.broadcast %c0_i32_32 : i32 to vector<32x32xi32>
    %89 = arith.cmpi sge, %87, %88 : vector<32x32xi32>
    %c0_i32_33 = arith.constant 0 : i32
    %90 = vector.broadcast %c0_i32_33 : i32 to vector<32x32xi32>
    %91 = arith.addi %61, %90 : vector<32x32xi32>
    %c16_i32_34 = arith.constant 16 : i32
    %92 = vector.broadcast %c16_i32_34 : i32 to vector<32x32xi32>
    %93 = arith.cmpi slt, %91, %92 : vector<32x32xi32>
    %94 = arith.andi %89, %93 : vector<32x32xi1>
    %cst_35 = arith.constant 0.000000e+00 : f32
    %95 = vector.broadcast %cst_35 : f32 to vector<32x32xf32>
    %96 = arith.select %94, %44, %95 : vector<32x32xi1>, vector<32x32xf32>
    %c31_i32 = arith.constant 31 : i32
    %97 = tpu.dynamic_rotate %44 by %c31_i32 dim 0 : vector<32x32xf32>, i32 -> vector<32x32xf32>
    %c1_i32_36 = arith.constant 1 : i32
    %98 = vector.broadcast %c1_i32_36 : i32 to vector<32x32xi32>
    %99 = arith.addi %61, %98 : vector<32x32xi32>
    %c0_i32_37 = arith.constant 0 : i32
    %100 = vector.broadcast %c0_i32_37 : i32 to vector<32x32xi32>
    %101 = arith.cmpi sge, %99, %100 : vector<32x32xi32>
    %c1_i32_38 = arith.constant 1 : i32
    %102 = vector.broadcast %c1_i32_38 : i32 to vector<32x32xi32>
    %103 = arith.addi %61, %102 : vector<32x32xi32>
    %c16_i32_39 = arith.constant 16 : i32
    %104 = vector.broadcast %c16_i32_39 : i32 to vector<32x32xi32>
    %105 = arith.cmpi slt, %103, %104 : vector<32x32xi32>
    %106 = arith.andi %101, %105 : vector<32x32xi1>
    %cst_40 = arith.constant 0.000000e+00 : f32
    %107 = vector.broadcast %cst_40 : f32 to vector<32x32xf32>
    %108 = arith.select %106, %97, %107 : vector<32x32xi1>, vector<32x32xf32>
    %c30_i32 = arith.constant 30 : i32
    %109 = tpu.dynamic_rotate %44 by %c30_i32 dim 0 : vector<32x32xf32>, i32 -> vector<32x32xf32>
    %c2_i32_41 = arith.constant 2 : i32
    %110 = vector.broadcast %c2_i32_41 : i32 to vector<32x32xi32>
    %111 = arith.addi %61, %110 : vector<32x32xi32>
    %c0_i32_42 = arith.constant 0 : i32
    %112 = vector.broadcast %c0_i32_42 : i32 to vector<32x32xi32>
    %113 = arith.cmpi sge, %111, %112 : vector<32x32xi32>
    %c2_i32_43 = arith.constant 2 : i32
    %114 = vector.broadcast %c2_i32_43 : i32 to vector<32x32xi32>
    %115 = arith.addi %61, %114 : vector<32x32xi32>
    %c16_i32_44 = arith.constant 16 : i32
    %116 = vector.broadcast %c16_i32_44 : i32 to vector<32x32xi32>
    %117 = arith.cmpi slt, %115, %116 : vector<32x32xi32>
    %118 = arith.andi %113, %117 : vector<32x32xi1>
    %cst_45 = arith.constant 0.000000e+00 : f32
    %119 = vector.broadcast %cst_45 : f32 to vector<32x32xf32>
    %120 = arith.select %118, %109, %119 : vector<32x32xi1>, vector<32x32xf32>
    %121 = tpu.concatenate %73, %85, %96, %108, %120 in 1 : vector<32x32xf32>, vector<32x32xf32>, vector<32x32xf32>, vector<32x32xf32>, vector<32x32xf32> -> vector<32x160xf32>
    %c0_46 = arith.constant 0 : index
    %c0_47 = arith.constant 0 : index
    %c0_48 = arith.constant 0 : index
    %122 = vector.load %arg5[%c0_46, %c0_47, %c0_48] : memref<2x160x64xf32, #tpu.memory_space<vmem>>, vector<1x160x64xf32>
    %123 = vector.shape_cast %122 : vector<1x160x64xf32> to vector<160x64xf32>
    %cst_49 = arith.constant dense<0.000000e+00> : vector<32x64xf32>
    %124 = tpu.matmul %121, %123, %cst_49 {dimension_numbers = #tpu.dot_dimension_numbers<[1], [0], [0], [1], [0, 0, 1, 1], [], []>} : vector<32x160xf32>, vector<160x64xf32>, vector<32x64xf32> -> vector<32x64xf32>
    %c0_50 = arith.constant 0 : index
    %c0_51 = arith.constant 0 : index
    %c0_52 = arith.constant 0 : index
    %125 = vector.load %arg6[%c0_50, %c0_51, %c0_52] : memref<2x1x64xf32, #tpu.memory_space<vmem>>, vector<1x1x64xf32>
    %126 = vector.shape_cast %125 : vector<1x1x64xf32> to vector<1x64xf32>
    %127 = vector.broadcast %126 : vector<1x64xf32> to vector<32x64xf32>
    %128 = arith.addf %124, %127 : vector<32x64xf32>
    %cst_53 = arith.constant 0.000000e+00 : f32
    %129 = vector.broadcast %cst_53 : f32 to vector<32x64xf32>
    %130 = arith.maximumf %128, %129 : vector<32x64xf32>
    %131 = vector.broadcast %cst_53 : f32 to vector<32x64xf32>
    %132 = arith.subf %128, %131 : vector<32x64xf32>
    %133 = arith.cmpf one, %132, %132 : vector<32x64xf32>
    %134 = vector.broadcast %cst_53 : f32 to vector<32x64xf32>
    %135 = arith.addf %128, %134 : vector<32x64xf32>
    %136 = math.absf %132 : vector<32x64xf32>
    %cst_54 = arith.constant 0.000000e+00 : f32
    %137 = vector.broadcast %cst_54 : f32 to vector<32x64xf32>
    %138 = arith.subf %137, %136 : vector<32x64xf32>
    %139 = math.exp %138 : vector<32x64xf32>
    %140 = math.log1p %139 : vector<32x64xf32>
    %141 = arith.addf %130, %140 : vector<32x64xf32>
    %142 = arith.select %133, %135, %141 : vector<32x64xi1>, vector<32x64xf32>
    %143 = math.tanh %142 : vector<32x64xf32>
    %144 = arith.mulf %128, %143 : vector<32x64xf32>
    %145 = vector.extract_strided_slice %144 {offsets = [0, 0], sizes = [32, 32], strides = [1, 1]} : vector<32x64xf32> to vector<32x32xf32>
    %146 = vector.extract_strided_slice %144 {offsets = [0, 32], sizes = [32, 32], strides = [1, 1]} : vector<32x64xf32> to vector<32x32xf32>
    %147 = arith.negf %146 : vector<32x32xf32>
    %148 = math.exp %147 : vector<32x32xf32>
    %cst_55 = arith.constant 1.000000e+00 : f32
    %149 = vector.broadcast %cst_55 : f32 to vector<32x32xf32>
    %150 = arith.addf %149, %148 : vector<32x32xf32>
    %151 = arith.divf %149, %150 : vector<32x32xf32>
    %152 = arith.mulf %145, %151 : vector<32x32xf32>
    %153 = arith.addf %44, %152 : vector<32x32xf32>
    %c2_i32_56 = arith.constant 2 : i32
    %154 = tpu.dynamic_rotate %153 by %c2_i32_56 dim 0 : vector<32x32xf32>, i32 -> vector<32x32xf32>
    %c-2_i32_57 = arith.constant -2 : i32
    %155 = vector.broadcast %c-2_i32_57 : i32 to vector<32x32xi32>
    %156 = arith.addi %61, %155 : vector<32x32xi32>
    %c0_i32_58 = arith.constant 0 : i32
    %157 = vector.broadcast %c0_i32_58 : i32 to vector<32x32xi32>
    %158 = arith.cmpi sge, %156, %157 : vector<32x32xi32>
    %c-2_i32_59 = arith.constant -2 : i32
    %159 = vector.broadcast %c-2_i32_59 : i32 to vector<32x32xi32>
    %160 = arith.addi %61, %159 : vector<32x32xi32>
    %c16_i32_60 = arith.constant 16 : i32
    %161 = vector.broadcast %c16_i32_60 : i32 to vector<32x32xi32>
    %162 = arith.cmpi slt, %160, %161 : vector<32x32xi32>
    %163 = arith.andi %158, %162 : vector<32x32xi1>
    %cst_61 = arith.constant 0.000000e+00 : f32
    %164 = vector.broadcast %cst_61 : f32 to vector<32x32xf32>
    %165 = arith.select %163, %154, %164 : vector<32x32xi1>, vector<32x32xf32>
    %c1_i32_62 = arith.constant 1 : i32
    %166 = tpu.dynamic_rotate %153 by %c1_i32_62 dim 0 : vector<32x32xf32>, i32 -> vector<32x32xf32>
    %c-1_i32_63 = arith.constant -1 : i32
    %167 = vector.broadcast %c-1_i32_63 : i32 to vector<32x32xi32>
    %168 = arith.addi %61, %167 : vector<32x32xi32>
    %c0_i32_64 = arith.constant 0 : i32
    %169 = vector.broadcast %c0_i32_64 : i32 to vector<32x32xi32>
    %170 = arith.cmpi sge, %168, %169 : vector<32x32xi32>
    %c-1_i32_65 = arith.constant -1 : i32
    %171 = vector.broadcast %c-1_i32_65 : i32 to vector<32x32xi32>
    %172 = arith.addi %61, %171 : vector<32x32xi32>
    %c16_i32_66 = arith.constant 16 : i32
    %173 = vector.broadcast %c16_i32_66 : i32 to vector<32x32xi32>
    %174 = arith.cmpi slt, %172, %173 : vector<32x32xi32>
    %175 = arith.andi %170, %174 : vector<32x32xi1>
    %cst_67 = arith.constant 0.000000e+00 : f32
    %176 = vector.broadcast %cst_67 : f32 to vector<32x32xf32>
    %177 = arith.select %175, %166, %176 : vector<32x32xi1>, vector<32x32xf32>
    %c0_i32_68 = arith.constant 0 : i32
    %178 = vector.broadcast %c0_i32_68 : i32 to vector<32x32xi32>
    %179 = arith.addi %61, %178 : vector<32x32xi32>
    %c0_i32_69 = arith.constant 0 : i32
    %180 = vector.broadcast %c0_i32_69 : i32 to vector<32x32xi32>
    %181 = arith.cmpi sge, %179, %180 : vector<32x32xi32>
    %c0_i32_70 = arith.constant 0 : i32
    %182 = vector.broadcast %c0_i32_70 : i32 to vector<32x32xi32>
    %183 = arith.addi %61, %182 : vector<32x32xi32>
    %c16_i32_71 = arith.constant 16 : i32
    %184 = vector.broadcast %c16_i32_71 : i32 to vector<32x32xi32>
    %185 = arith.cmpi slt, %183, %184 : vector<32x32xi32>
    %186 = arith.andi %181, %185 : vector<32x32xi1>
    %cst_72 = arith.constant 0.000000e+00 : f32
    %187 = vector.broadcast %cst_72 : f32 to vector<32x32xf32>
    %188 = arith.select %186, %153, %187 : vector<32x32xi1>, vector<32x32xf32>
    %c31_i32_73 = arith.constant 31 : i32
    %189 = tpu.dynamic_rotate %153 by %c31_i32_73 dim 0 : vector<32x32xf32>, i32 -> vector<32x32xf32>
    %c1_i32_74 = arith.constant 1 : i32
    %190 = vector.broadcast %c1_i32_74 : i32 to vector<32x32xi32>
    %191 = arith.addi %61, %190 : vector<32x32xi32>
    %c0_i32_75 = arith.constant 0 : i32
    %192 = vector.broadcast %c0_i32_75 : i32 to vector<32x32xi32>
    %193 = arith.cmpi sge, %191, %192 : vector<32x32xi32>
    %c1_i32_76 = arith.constant 1 : i32
    %194 = vector.broadcast %c1_i32_76 : i32 to vector<32x32xi32>
    %195 = arith.addi %61, %194 : vector<32x32xi32>
    %c16_i32_77 = arith.constant 16 : i32
    %196 = vector.broadcast %c16_i32_77 : i32 to vector<32x32xi32>
    %197 = arith.cmpi slt, %195, %196 : vector<32x32xi32>
    %198 = arith.andi %193, %197 : vector<32x32xi1>
    %cst_78 = arith.constant 0.000000e+00 : f32
    %199 = vector.broadcast %cst_78 : f32 to vector<32x32xf32>
    %200 = arith.select %198, %189, %199 : vector<32x32xi1>, vector<32x32xf32>
    %c30_i32_79 = arith.constant 30 : i32
    %201 = tpu.dynamic_rotate %153 by %c30_i32_79 dim 0 : vector<32x32xf32>, i32 -> vector<32x32xf32>
    %c2_i32_80 = arith.constant 2 : i32
    %202 = vector.broadcast %c2_i32_80 : i32 to vector<32x32xi32>
    %203 = arith.addi %61, %202 : vector<32x32xi32>
    %c0_i32_81 = arith.constant 0 : i32
    %204 = vector.broadcast %c0_i32_81 : i32 to vector<32x32xi32>
    %205 = arith.cmpi sge, %203, %204 : vector<32x32xi32>
    %c2_i32_82 = arith.constant 2 : i32
    %206 = vector.broadcast %c2_i32_82 : i32 to vector<32x32xi32>
    %207 = arith.addi %61, %206 : vector<32x32xi32>
    %c16_i32_83 = arith.constant 16 : i32
    %208 = vector.broadcast %c16_i32_83 : i32 to vector<32x32xi32>
    %209 = arith.cmpi slt, %207, %208 : vector<32x32xi32>
    %210 = arith.andi %205, %209 : vector<32x32xi1>
    %cst_84 = arith.constant 0.000000e+00 : f32
    %211 = vector.broadcast %cst_84 : f32 to vector<32x32xf32>
    %212 = arith.select %210, %201, %211 : vector<32x32xi1>, vector<32x32xf32>
    %213 = tpu.concatenate %165, %177, %188, %200, %212 in 1 : vector<32x32xf32>, vector<32x32xf32>, vector<32x32xf32>, vector<32x32xf32>, vector<32x32xf32> -> vector<32x160xf32>
    %c1_85 = arith.constant 1 : index
    %c0_86 = arith.constant 0 : index
    %c0_87 = arith.constant 0 : index
    %214 = vector.load %arg5[%c1_85, %c0_86, %c0_87] : memref<2x160x64xf32, #tpu.memory_space<vmem>>, vector<1x160x64xf32>
    %215 = vector.shape_cast %214 : vector<1x160x64xf32> to vector<160x64xf32>
    %cst_88 = arith.constant dense<0.000000e+00> : vector<32x64xf32>
    %216 = tpu.matmul %213, %215, %cst_88 {dimension_numbers = #tpu.dot_dimension_numbers<[1], [0], [0], [1], [0, 0, 1, 1], [], []>} : vector<32x160xf32>, vector<160x64xf32>, vector<32x64xf32> -> vector<32x64xf32>
    %c1_89 = arith.constant 1 : index
    %c0_90 = arith.constant 0 : index
    %c0_91 = arith.constant 0 : index
    %217 = vector.load %arg6[%c1_89, %c0_90, %c0_91] : memref<2x1x64xf32, #tpu.memory_space<vmem>>, vector<1x1x64xf32>
    %218 = vector.shape_cast %217 : vector<1x1x64xf32> to vector<1x64xf32>
    %219 = vector.broadcast %218 : vector<1x64xf32> to vector<32x64xf32>
    %220 = arith.addf %216, %219 : vector<32x64xf32>
    %cst_92 = arith.constant 0.000000e+00 : f32
    %221 = vector.broadcast %cst_92 : f32 to vector<32x64xf32>
    %222 = arith.maximumf %220, %221 : vector<32x64xf32>
    %223 = vector.broadcast %cst_92 : f32 to vector<32x64xf32>
    %224 = arith.subf %220, %223 : vector<32x64xf32>
    %225 = arith.cmpf one, %224, %224 : vector<32x64xf32>
    %226 = vector.broadcast %cst_92 : f32 to vector<32x64xf32>
    %227 = arith.addf %220, %226 : vector<32x64xf32>
    %228 = math.absf %224 : vector<32x64xf32>
    %cst_93 = arith.constant 0.000000e+00 : f32
    %229 = vector.broadcast %cst_93 : f32 to vector<32x64xf32>
    %230 = arith.subf %229, %228 : vector<32x64xf32>
    %231 = math.exp %230 : vector<32x64xf32>
    %232 = math.log1p %231 : vector<32x64xf32>
    %233 = arith.addf %222, %232 : vector<32x64xf32>
    %234 = arith.select %225, %227, %233 : vector<32x64xi1>, vector<32x64xf32>
    %235 = math.tanh %234 : vector<32x64xf32>
    %236 = arith.mulf %220, %235 : vector<32x64xf32>
    %237 = vector.extract_strided_slice %236 {offsets = [0, 0], sizes = [32, 32], strides = [1, 1]} : vector<32x64xf32> to vector<32x32xf32>
    %238 = vector.extract_strided_slice %236 {offsets = [0, 32], sizes = [32, 32], strides = [1, 1]} : vector<32x64xf32> to vector<32x32xf32>
    %239 = arith.negf %238 : vector<32x32xf32>
    %240 = math.exp %239 : vector<32x32xf32>
    %cst_94 = arith.constant 1.000000e+00 : f32
    %241 = vector.broadcast %cst_94 : f32 to vector<32x32xf32>
    %242 = arith.addf %241, %240 : vector<32x32xf32>
    %243 = arith.divf %241, %242 : vector<32x32xf32>
    %244 = arith.mulf %237, %243 : vector<32x32xf32>
    %245 = arith.addf %153, %244 : vector<32x32xf32>
    %c0_95 = arith.constant 0 : index
    %c0_96 = arith.constant 0 : index
    %c0_97 = arith.constant 0 : index
    %246 = vector.load %arg7[%c0_95, %c0_96, %c0_97] : memref<1x32x32xf32, #tpu.memory_space<vmem>>, vector<1x32x32xf32>
    %247 = vector.shape_cast %246 : vector<1x32x32xf32> to vector<32x32xf32>
    %cst_98 = arith.constant dense<0.000000e+00> : vector<32x32xf32>
    %248 = tpu.matmul %245, %247, %cst_98 {dimension_numbers = #tpu.dot_dimension_numbers<[1], [0], [0], [1], [0, 0, 1, 1], [], []>} : vector<32x32xf32>, vector<32x32xf32>, vector<32x32xf32> -> vector<32x32xf32>
    %c0_99 = arith.constant 0 : index
    %c0_100 = arith.constant 0 : index
    %c0_101 = arith.constant 0 : index
    %249 = vector.load %arg8[%c0_99, %c0_100, %c0_101] : memref<1x32x32xf32, #tpu.memory_space<vmem>>, vector<1x32x32xf32>
    %250 = vector.shape_cast %249 : vector<1x32x32xf32> to vector<32x32xf32>
    %cst_102 = arith.constant dense<0.000000e+00> : vector<32x32xf32>
    %251 = tpu.matmul %245, %250, %cst_102 {dimension_numbers = #tpu.dot_dimension_numbers<[1], [0], [0], [1], [0, 0, 1, 1], [], []>} : vector<32x32xf32>, vector<32x32xf32>, vector<32x32xf32> -> vector<32x32xf32>
    %c0_103 = arith.constant 0 : index
    %c0_104 = arith.constant 0 : index
    %c0_105 = arith.constant 0 : index
    %252 = vector.load %arg9[%c0_103, %c0_104, %c0_105] : memref<1x32x32xf32, #tpu.memory_space<vmem>>, vector<1x32x32xf32>
    %253 = vector.shape_cast %252 : vector<1x32x32xf32> to vector<32x32xf32>
    %cst_106 = arith.constant dense<0.000000e+00> : vector<32x32xf32>
    %254 = tpu.matmul %245, %253, %cst_106 {dimension_numbers = #tpu.dot_dimension_numbers<[1], [0], [0], [1], [0, 0, 1, 1], [], []>} : vector<32x32xf32>, vector<32x32xf32>, vector<32x32xf32> -> vector<32x32xf32>
    %255 = vector.shape_cast %248 : vector<32x32xf32> to vector<2x16x32xf32>
    %256 = vector.shape_cast %251 : vector<32x32xf32> to vector<2x16x32xf32>
    %257 = vector.shape_cast %254 : vector<32x32xf32> to vector<2x16x32xf32>
    %258 = vector.extract_strided_slice %255 {offsets = [0, 0, 0], sizes = [2, 16, 16], strides = [1, 1, 1]} : vector<2x16x32xf32> to vector<2x16x16xf32>
    %259 = vector.extract_strided_slice %256 {offsets = [0, 0, 0], sizes = [2, 16, 16], strides = [1, 1, 1]} : vector<2x16x32xf32> to vector<2x16x16xf32>
    %260 = vector.extract_strided_slice %257 {offsets = [0, 0, 0], sizes = [2, 16, 16], strides = [1, 1, 1]} : vector<2x16x32xf32> to vector<2x16x16xf32>
    "tpu.trace_start"() <{level = 10 : i32, message = "bqd,bkd->bqk"}> : () -> ()
    %cst_107 = arith.constant dense<0.000000e+00> : vector<2x16x16xf32>
    %261 = tpu.matmul %258, %259, %cst_107 {dimension_numbers = #tpu.dot_dimension_numbers<[2], [2], [1], [1], [0, 0, 0, 1, 1, 1], [0], [0]>} : vector<2x16x16xf32>, vector<2x16x16xf32>, vector<2x16x16xf32> -> vector<2x16x16xf32>
    "tpu.trace_stop"() : () -> ()
    %cst_108 = arith.constant 2.500000e-01 : f32
    %262 = vector.broadcast %cst_108 : f32 to vector<2x16x16xf32>
    %263 = arith.mulf %261, %262 : vector<2x16x16xf32>
    %cst_109 = arith.constant -1.000000e+09 : f32
    %264 = vector.shape_cast %4 : vector<2x1x16xi1> to vector<2x1x16xi1>
    %265 = vector.broadcast %264 : vector<2x1x16xi1> to vector<2x16x16xi1>
    %266 = vector.broadcast %cst_109 : f32 to vector<2x16x16xf32>
    %267 = arith.select %265, %266, %263 : vector<2x16x16xi1>, vector<2x16x16xf32>
    %cst_110 = arith.constant dense<0xFF800000> : vector<2x16xf32>
    %268 = vector.multi_reduction <maximumf>, %267, %cst_110 [2] : vector<2x16x16xf32> to vector<2x16xf32>
    %269 = vector.shape_cast %268 : vector<2x16xf32> to vector<2x16x1xf32>
    %270 = vector.broadcast %269 : vector<2x16x1xf32> to vector<2x16x16xf32>
    %271 = arith.subf %267, %270 : vector<2x16x16xf32>
    %272 = math.exp %271 : vector<2x16x16xf32>
    %cst_111 = arith.constant dense<0.000000e+00> : vector<2x16xf32>
    %273 = vector.multi_reduction <add>, %272, %cst_111 [2] : vector<2x16x16xf32> to vector<2x16xf32>
    %274 = vector.shape_cast %273 : vector<2x16xf32> to vector<2x16x1xf32>
    %275 = tpu.reciprocal %274 {approx = true} : vector<2x16x1xf32> -> vector<2x16x1xf32>
    %276 = vector.broadcast %275 : vector<2x16x1xf32> to vector<2x16x16xf32>
    %277 = arith.mulf %272, %276 : vector<2x16x16xf32>
    "tpu.trace_start"() <{level = 10 : i32, message = "bqk,bkd->bqd"}> : () -> ()
    %cst_112 = arith.constant dense<0.000000e+00> : vector<2x16x16xf32>
    %278 = tpu.matmul %277, %260, %cst_112 {dimension_numbers = #tpu.dot_dimension_numbers<[2], [1], [1], [2], [0, 0, 0, 1, 1, 2], [0], [0]>} : vector<2x16x16xf32>, vector<2x16x16xf32>, vector<2x16x16xf32> -> vector<2x16x16xf32>
    "tpu.trace_stop"() : () -> ()
    %279 = vector.extract_strided_slice %255 {offsets = [0, 0, 16], sizes = [2, 16, 16], strides = [1, 1, 1]} : vector<2x16x32xf32> to vector<2x16x16xf32>
    %280 = vector.extract_strided_slice %256 {offsets = [0, 0, 16], sizes = [2, 16, 16], strides = [1, 1, 1]} : vector<2x16x32xf32> to vector<2x16x16xf32>
    %281 = vector.extract_strided_slice %257 {offsets = [0, 0, 16], sizes = [2, 16, 16], strides = [1, 1, 1]} : vector<2x16x32xf32> to vector<2x16x16xf32>
    "tpu.trace_start"() <{level = 10 : i32, message = "bqd,bkd->bqk"}> : () -> ()
    %cst_113 = arith.constant dense<0.000000e+00> : vector<2x16x16xf32>
    %282 = tpu.matmul %279, %280, %cst_113 {dimension_numbers = #tpu.dot_dimension_numbers<[2], [2], [1], [1], [0, 0, 0, 1, 1, 1], [0], [0]>} : vector<2x16x16xf32>, vector<2x16x16xf32>, vector<2x16x16xf32> -> vector<2x16x16xf32>
    "tpu.trace_stop"() : () -> ()
    %cst_114 = arith.constant 2.500000e-01 : f32
    %283 = vector.broadcast %cst_114 : f32 to vector<2x16x16xf32>
    %284 = arith.mulf %282, %283 : vector<2x16x16xf32>
    %cst_115 = arith.constant -1.000000e+09 : f32
    %285 = vector.shape_cast %4 : vector<2x1x16xi1> to vector<2x1x16xi1>
    %286 = vector.broadcast %285 : vector<2x1x16xi1> to vector<2x16x16xi1>
    %287 = vector.broadcast %cst_115 : f32 to vector<2x16x16xf32>
    %288 = arith.select %286, %287, %284 : vector<2x16x16xi1>, vector<2x16x16xf32>
    %cst_116 = arith.constant dense<0xFF800000> : vector<2x16xf32>
    %289 = vector.multi_reduction <maximumf>, %288, %cst_116 [2] : vector<2x16x16xf32> to vector<2x16xf32>
    %290 = vector.shape_cast %289 : vector<2x16xf32> to vector<2x16x1xf32>
    %291 = vector.broadcast %290 : vector<2x16x1xf32> to vector<2x16x16xf32>
    %292 = arith.subf %288, %291 : vector<2x16x16xf32>
    %293 = math.exp %292 : vector<2x16x16xf32>
    %cst_117 = arith.constant dense<0.000000e+00> : vector<2x16xf32>
    %294 = vector.multi_reduction <add>, %293, %cst_117 [2] : vector<2x16x16xf32> to vector<2x16xf32>
    %295 = vector.shape_cast %294 : vector<2x16xf32> to vector<2x16x1xf32>
    %296 = tpu.reciprocal %295 {approx = true} : vector<2x16x1xf32> -> vector<2x16x1xf32>
    %297 = vector.broadcast %296 : vector<2x16x1xf32> to vector<2x16x16xf32>
    %298 = arith.mulf %293, %297 : vector<2x16x16xf32>
    "tpu.trace_start"() <{level = 10 : i32, message = "bqk,bkd->bqd"}> : () -> ()
    %cst_118 = arith.constant dense<0.000000e+00> : vector<2x16x16xf32>
    %299 = tpu.matmul %298, %281, %cst_118 {dimension_numbers = #tpu.dot_dimension_numbers<[2], [1], [1], [2], [0, 0, 0, 1, 1, 2], [0], [0]>} : vector<2x16x16xf32>, vector<2x16x16xf32>, vector<2x16x16xf32> -> vector<2x16x16xf32>
    "tpu.trace_stop"() : () -> ()
    %300 = tpu.concatenate %278, %299 in 2 : vector<2x16x16xf32>, vector<2x16x16xf32> -> vector<2x16x32xf32>
    %301 = vector.shape_cast %300 : vector<2x16x32xf32> to vector<32x32xf32>
    %c0_119 = arith.constant 0 : index
    %c0_120 = arith.constant 0 : index
    %c0_121 = arith.constant 0 : index
    %302 = vector.load %arg10[%c0_119, %c0_120, %c0_121] : memref<1x32x32xf32, #tpu.memory_space<vmem>>, vector<1x32x32xf32>
    %303 = vector.shape_cast %302 : vector<1x32x32xf32> to vector<32x32xf32>
    %cst_122 = arith.constant dense<0.000000e+00> : vector<32x32xf32>
    %304 = tpu.matmul %301, %303, %cst_122 {dimension_numbers = #tpu.dot_dimension_numbers<[1], [0], [0], [1], [0, 0, 1, 1], [], []>} : vector<32x32xf32>, vector<32x32xf32>, vector<32x32xf32> -> vector<32x32xf32>
    %cst_123 = arith.constant dense<0.000000e+00> : vector<32xf32>
    %305 = vector.multi_reduction <add>, %304, %cst_123 [1] : vector<32x32xf32> to vector<32xf32>
    %306 = vector.shape_cast %305 : vector<32xf32> to vector<32x1xf32>
    %cst_124 = arith.constant 3.200000e+01 : f32
    %307 = vector.broadcast %cst_124 : f32 to vector<32x1xf32>
    %308 = arith.divf %306, %307 : vector<32x1xf32>
    %309 = vector.broadcast %308 : vector<32x1xf32> to vector<32x32xf32>
    %310 = arith.subf %304, %309 : vector<32x32xf32>
    %311 = arith.mulf %310, %310 : vector<32x32xf32>
    %cst_125 = arith.constant dense<0.000000e+00> : vector<32xf32>
    %312 = vector.multi_reduction <add>, %311, %cst_125 [1] : vector<32x32xf32> to vector<32xf32>
    %313 = vector.shape_cast %312 : vector<32xf32> to vector<32x1xf32>
    %cst_126 = arith.constant 3.200000e+01 : f32
    %314 = vector.broadcast %cst_126 : f32 to vector<32x1xf32>
    %315 = arith.divf %313, %314 : vector<32x1xf32>
    %316 = vector.broadcast %308 : vector<32x1xf32> to vector<32x32xf32>
    %317 = arith.subf %304, %316 : vector<32x32xf32>
    %cst_127 = arith.constant 9.99999974E-6 : f32
    %318 = vector.broadcast %cst_127 : f32 to vector<32x1xf32>
    %319 = arith.addf %315, %318 : vector<32x1xf32>
    %320 = math.rsqrt %319 : vector<32x1xf32>
    %321 = vector.broadcast %320 : vector<32x1xf32> to vector<32x32xf32>
    %322 = arith.mulf %317, %321 : vector<32x32xf32>
    %c0_128 = arith.constant 0 : index
    %c0_129 = arith.constant 0 : index
    %c0_130 = arith.constant 0 : index
    %323 = vector.load %arg11[%c0_128, %c0_129, %c0_130] : memref<1x1x32xf32, #tpu.memory_space<vmem>>, vector<1x1x32xf32>
    %324 = vector.shape_cast %323 : vector<1x1x32xf32> to vector<1x32xf32>
    %325 = vector.broadcast %324 : vector<1x32xf32> to vector<32x32xf32>
    %326 = arith.mulf %322, %325 : vector<32x32xf32>
    %c0_131 = arith.constant 0 : index
    %c0_132 = arith.constant 0 : index
    %c0_133 = arith.constant 0 : index
    %327 = vector.load %arg12[%c0_131, %c0_132, %c0_133] : memref<1x1x32xf32, #tpu.memory_space<vmem>>, vector<1x1x32xf32>
    %328 = vector.shape_cast %327 : vector<1x1x32xf32> to vector<1x32xf32>
    %329 = vector.broadcast %328 : vector<1x32xf32> to vector<32x32xf32>
    %330 = arith.addf %326, %329 : vector<32x32xf32>
    %331 = arith.addf %245, %330 : vector<32x32xf32>
    %c0_134 = arith.constant 0 : index
    %c0_135 = arith.constant 0 : index
    %332 = vector.load %arg13[%c0_134, %c0_135] : memref<32x32xf32, #tpu.memory_space<vmem>>, vector<32x32xf32>
    %cst_136 = arith.constant dense<0.000000e+00> : vector<32x32xf32>
    %333 = tpu.matmul %331, %332, %cst_136 {dimension_numbers = #tpu.dot_dimension_numbers<[1], [0], [0], [1], [0, 0, 1, 1], [], []>} : vector<32x32xf32>, vector<32x32xf32>, vector<32x32xf32> -> vector<32x32xf32>
    %334 = vector.shape_cast %333 : vector<32x32xf32> to vector<2x16x32xf32>
    %cst_137 = arith.constant dense<0.000000e+00> : vector<2x32xf32>
    %335 = vector.multi_reduction <add>, %334, %cst_137 [1] : vector<2x16x32xf32> to vector<2x32xf32>
    %336 = vector.shape_cast %335 : vector<2x32xf32> to vector<2x1x32xf32>
    %cst_138 = arith.constant 1.600000e+01 : f32
    %337 = vector.broadcast %cst_138 : f32 to vector<2x1x32xf32>
    %338 = arith.divf %336, %337 : vector<2x1x32xf32>
    %c0_139 = arith.constant 0 : index
    %c0_140 = arith.constant 0 : index
    %c0_141 = arith.constant 0 : index
    %339 = vector.load %arg14[%c0_139, %c0_140, %c0_141] : memref<2x1x32xf32, #tpu.memory_space<vmem>>, vector<2x1x32xf32>
    tpu.vector_store %arg14[%c0_139, %c0_140, %c0_141], %338 {strides = array<i32>} : memref<2x1x32xf32, #tpu.memory_space<vmem>>, vector<2x1x32xf32>,
    return
  }
  func.func @transform_0(%arg0: i32) -> (i32, i32, i32) {
    %c0_i32 = arith.constant 0 : i32
    %c0_i32_0 = arith.constant 0 : i32
    %c0_i32_1 = arith.constant 0 : i32
    return %arg0, %c0_i32, %c0_i32_0 : i32, i32, i32
  }
  func.func @transform_1(%arg0: i32) -> (i32, i32, i32) {
    %c0_i32 = arith.constant 0 : i32
    %c0_i32_0 = arith.constant 0 : i32
    %c0_i32_1 = arith.constant 0 : i32
    return %arg0, %c0_i32, %c0_i32_0 : i32, i32, i32
  }
  func.func @transform_2(%arg0: i32) -> (i32, i32) {
    %c0_i32 = arith.constant 0 : i32
    %c0_i32_0 = arith.constant 0 : i32
    %c0_i32_1 = arith.constant 0 : i32
    return %c0_i32, %c0_i32_0 : i32, i32
  }
  func.func @transform_3(%arg0: i32) -> (i32, i32, i32) {
    %c0_i32 = arith.constant 0 : i32
    %c0_i32_0 = arith.constant 0 : i32
    %c0_i32_1 = arith.constant 0 : i32
    %c0_i32_2 = arith.constant 0 : i32
    return %c0_i32, %c0_i32_0, %c0_i32_1 : i32, i32, i32
  }
  func.func @transform_4(%arg0: i32) -> (i32, i32, i32) {
    %c0_i32 = arith.constant 0 : i32
    %c0_i32_0 = arith.constant 0 : i32
    %c0_i32_1 = arith.constant 0 : i32
    %c0_i32_2 = arith.constant 0 : i32
    return %c0_i32, %c0_i32_0, %c0_i32_1 : i32, i32, i32
  }
  func.func @transform_5(%arg0: i32) -> (i32, i32, i32) {
    %c0_i32 = arith.constant 0 : i32
    %c0_i32_0 = arith.constant 0 : i32
    %c0_i32_1 = arith.constant 0 : i32
    %c0_i32_2 = arith.constant 0 : i32
    return %c0_i32, %c0_i32_0, %c0_i32_1 : i32, i32, i32
  }
  func.func @transform_6(%arg0: i32) -> (i32, i32, i32) {
    %c0_i32 = arith.constant 0 : i32
    %c0_i32_0 = arith.constant 0 : i32
    %c0_i32_1 = arith.constant 0 : i32
    %c0_i32_2 = arith.constant 0 : i32
    return %c0_i32, %c0_i32_0, %c0_i32_1 : i32, i32, i32
  }
  func.func @transform_7(%arg0: i32) -> (i32, i32, i32) {
    %c0_i32 = arith.constant 0 : i32
    %c0_i32_0 = arith.constant 0 : i32
    %c0_i32_1 = arith.constant 0 : i32
    %c0_i32_2 = arith.constant 0 : i32
    return %c0_i32, %c0_i32_0, %c0_i32_1 : i32, i32, i32
  }
  func.func @transform_8(%arg0: i32) -> (i32, i32, i32) {
    %c0_i32 = arith.constant 0 : i32
    %c0_i32_0 = arith.constant 0 : i32
    %c0_i32_1 = arith.constant 0 : i32
    %c0_i32_2 = arith.constant 0 : i32
    return %c0_i32, %c0_i32_0, %c0_i32_1 : i32, i32, i32
  }
  func.func @transform_9(%arg0: i32) -> (i32, i32, i32) {
    %c0_i32 = arith.constant 0 : i32
    %c0_i32_0 = arith.constant 0 : i32
    %c0_i32_1 = arith.constant 0 : i32
    %c0_i32_2 = arith.constant 0 : i32
    return %c0_i32, %c0_i32_0, %c0_i32_1 : i32, i32, i32
  }
  func.func @transform_10(%arg0: i32) -> (i32, i32, i32) {
    %c0_i32 = arith.constant 0 : i32
    %c0_i32_0 = arith.constant 0 : i32
    %c0_i32_1 = arith.constant 0 : i32
    %c0_i32_2 = arith.constant 0 : i32
    return %c0_i32, %c0_i32_0, %c0_i32_1 : i32, i32, i32
  }
  func.func @transform_11(%arg0: i32) -> (i32, i32, i32) {
    %c0_i32 = arith.constant 0 : i32
    %c0_i32_0 = arith.constant 0 : i32
    %c0_i32_1 = arith.constant 0 : i32
    %c0_i32_2 = arith.constant 0 : i32
    return %c0_i32, %c0_i32_0, %c0_i32_1 : i32, i32, i32
  }
  func.func @transform_12(%arg0: i32) -> (i32, i32) {
    %c0_i32 = arith.constant 0 : i32
    %c0_i32_0 = arith.constant 0 : i32
    %c0_i32_1 = arith.constant 0 : i32
    return %c0_i32, %c0_i32_0 : i32, i32
  }
  func.func @transform_13(%arg0: i32) -> (i32, i32, i32) {
    %c0_i32 = arith.constant 0 : i32
    %c0_i32_0 = arith.constant 0 : i32
    %c0_i32_1 = arith.constant 0 : i32
    return %arg0, %c0_i32, %c0_i32_0 : i32, i32, i32
  }
}

</mosaic_0001>

<llo_original>
// kernel: _mel_style_encoder_call.1
$region0: #{_mel_style_encoder_call.1}
  #allocation0 [shape = 'u32[]', space=smem, size = 0x4, offset = 0x4, fixed_abs, tag = 'smem constant byte address 0x4 - core index']
  #allocation1 [shape = 'u32[72,128]{1,0:T(1,128)}', space=vmem, size = 0x9000, scoped, tag = 'internal scratch']
  %s0 = inlined_call_operand.vmem [shape: f32[2,16,16], index: 0, kind: input, shape index: {}]
  %s1 = inlined_call_operand.vmem [shape: f32[2,1,16], index: 1, kind: input, shape index: {}]
  %s2 = inlined_call_operand.vmem [shape: f32[16,32], index: 2, kind: input, shape index: {}]
  %s3 = inlined_call_operand.vmem [shape: f32[2,32,32], index: 3, kind: input, shape index: {}]
  %s4 = inlined_call_operand.vmem [shape: f32[2,160,64], index: 4, kind: input, shape index: {}]
  %s5 = inlined_call_operand.vmem [shape: f32[2,1,64], index: 5, kind: input, shape index: {}]
  %s6 = inlined_call_operand.vmem [shape: f32[1,32,32], index: 6, kind: input, shape index: {}]
  %s7 = inlined_call_operand.vmem [shape: f32[1,32,32], index: 7, kind: input, shape index: {}]
  %s8 = inlined_call_operand.vmem [shape: f32[1,32,32], index: 8, kind: input, shape index: {}]
  %s9 = inlined_call_operand.vmem [shape: f32[1,32,32], index: 9, kind: input, shape index: {}]
  %s10 = inlined_call_operand.vmem [shape: f32[1,1,32], index: 10, kind: input, shape index: {}]
  %s11 = inlined_call_operand.vmem [shape: f32[1,1,32], index: 11, kind: input, shape index: {}]
  %s12 = inlined_call_operand.vmem [shape: f32[32,32], index: 12, kind: input, shape index: {}]
  %s13 = inlined_call_operand.hbm [shape: f32[2,1,32], index: 13, kind: output, shape index: {}]
  %s14 = sld [smem:[#allocation0]]
  $region62: #{_mel_style_encoder_call.1} parent=0
    _
  %s16 = ssub.s32 1, %s14
  %s17 = scalar_select 0, %s16, %s14
  $region1: #{_mel_style_encoder_call.1} parent=0
    #allocation2 [shape = 'u8[1024]{0}', space=vmem, size = 0x400, scoped, tag = 'output window, operand 0, single buffered']
    #allocation3 [shape = 's32[1]{0}', space=sflag, size = 0x4, scoped, tag = 'scoped memory for _mel_style_encoder_call.1']
    %18 = vsyncpa [#allocation3], 0
    // Predicated region
    $region2: #{_mel_style_encoder_call.1} parent=1 // pred_check
      _
    $region3: #{_mel_style_encoder_call.1} parent=1 // pred_check_branch
      %20 = sbr.rel (0) target = $region5
    $region4: #{_mel_style_encoder_call.1} parent=1 // pred_region
      _
    $region5: #{_mel_style_encoder_call.1} parent=1 // pred_fallthru
      _
    // Predicated region
    $region6: #{_mel_style_encoder_call.1} parent=1 // pred_check
      _
    $region7: #{_mel_style_encoder_call.1} parent=1 // pred_check_branch
      %22 = sbr.rel (0) target = $region9
    $region8: #{_mel_style_encoder_call.1} parent=1 // pred_region
      _
    $region9: #{_mel_style_encoder_call.1} parent=1 // pred_fallthru
      _
    // Predicated region
    $region10: #{_mel_style_encoder_call.1} parent=1 // pred_check
      _
    $region11: #{_mel_style_encoder_call.1} parent=1 // pred_check_branch
      %24 = sbr.rel (0) target = $region13
    $region12: #{_mel_style_encoder_call.1} parent=1 // pred_region
      _
    $region13: #{_mel_style_encoder_call.1} parent=1 // pred_fallthru
      _
    // Predicated region
    $region14: #{_mel_style_encoder_call.1} parent=1 // pred_check
      _
    $region15: #{_mel_style_encoder_call.1} parent=1 // pred_check_branch
      %26 = sbr.rel (0) target = $region17
    $region16: #{_mel_style_encoder_call.1} parent=1 // pred_region
      _
    $region17: #{_mel_style_encoder_call.1} parent=1 // pred_fallthru
      _
    // Predicated region
    $region18: #{_mel_style_encoder_call.1} parent=1 // pred_check
      _
    $region19: #{_mel_style_encoder_call.1} parent=1 // pred_check_branch
      %28 = sbr.rel (0) target = $region21
    $region20: #{_mel_style_encoder_call.1} parent=1 // pred_region
      _
    $region21: #{_mel_style_encoder_call.1} parent=1 // pred_fallthru
      _
    // Predicated region
    $region22: #{_mel_style_encoder_call.1} parent=1 // pred_check
      _
    $region23: #{_mel_style_encoder_call.1} parent=1 // pred_check_branch
      %30 = sbr.rel (0) target = $region25
    $region24: #{_mel_style_encoder_call.1} parent=1 // pred_region
      _
    $region25: #{_mel_style_encoder_call.1} parent=1 // pred_fallthru
      _
    // Predicated region
    $region26: #{_mel_style_encoder_call.1} parent=1 // pred_check
      _
    $region27: #{_mel_style_encoder_call.1} parent=1 // pred_check_branch
      %32 = sbr.rel (0) target = $region29
    $region28: #{_mel_style_encoder_call.1} parent=1 // pred_region
      _
    $region29: #{_mel_style_encoder_call.1} parent=1 // pred_fallthru
      _
    // Predicated region
    $region30: #{_mel_style_encoder_call.1} parent=1 // pred_check
      _
    $region31: #{_mel_style_encoder_call.1} parent=1 // pred_check_branch
      %34 = sbr.rel (0) target = $region33
    $region32: #{_mel_style_encoder_call.1} parent=1 // pred_region
      _
    $region33: #{_mel_style_encoder_call.1} parent=1 // pred_fallthru
      _
    // Predicated region
    $region34: #{_mel_style_encoder_call.1} parent=1 // pred_check
      _
    $region35: #{_mel_style_encoder_call.1} parent=1 // pred_check_branch
      %36 = sbr.rel (0) target = $region37
    $region36: #{_mel_style_encoder_call.1} parent=1 // pred_region
      _
    $region37: #{_mel_style_encoder_call.1} parent=1 // pred_fallthru
      _
    // Predicated region
    $region38: #{_mel_style_encoder_call.1} parent=1 // pred_check
      _
    $region39: #{_mel_style_encoder_call.1} parent=1 // pred_check_branch
      %38 = sbr.rel (0) target = $region41
    $region40: #{_mel_style_encoder_call.1} parent=1 // pred_region
      _
    $region41: #{_mel_style_encoder_call.1} parent=1 // pred_fallthru
      _
    // Predicated region
    $region42: #{_mel_style_encoder_call.1} parent=1 // pred_check
      _
    $region43: #{_mel_style_encoder_call.1} parent=1 // pred_check_branch
      %40 = sbr.rel (0) target = $region45
    $region44: #{_mel_style_encoder_call.1} parent=1 // pred_region
      _
    $region45: #{_mel_style_encoder_call.1} parent=1 // pred_fallthru
      _
    // Predicated region
    $region46: #{_mel_style_encoder_call.1} parent=1 // pred_check
      _
    $region47: #{_mel_style_encoder_call.1} parent=1 // pred_check_branch
      %42 = sbr.rel (0) target = $region49
    $region48: #{_mel_style_encoder_call.1} parent=1 // pred_region
      _
    $region49: #{_mel_style_encoder_call.1} parent=1 // pred_fallthru
      _
    // Predicated region
    $region50: #{_mel_style_encoder_call.1} parent=1 // pred_check
      _
    $region51: #{_mel_style_encoder_call.1} parent=1 // pred_check_branch
      %44 = sbr.rel (0) target = $region53
    $region52: #{_mel_style_encoder_call.1} parent=1 // pred_region
      _
    $region53: #{_mel_style_encoder_call.1} parent=1 // pred_fallthru
      _
    %v45 = vld [vmem:[%s0] sm:$0xff]
    %v46 = vld [vmem:[%s0 + $0x8] sm:$0xff]
    %v47 = vld [vmem:[%s0 + $0x10] sm:$0xff]
    %v48 = vld [vmem:[%s0 + $0x18] sm:$0xff]
    %v49 = vld [vmem:[%s1] sm:$0x1]
    %v50 = vld [vmem:[%s1 + $0x1] sm:$0x1]
    %vm51 = vcmp.gt.f32.partialorder %v49, 0.5
    %vm52 = vcmp.gt.f32.partialorder %v50, 0.5
    %v53 = vld [vmem:[%s2] sm:$0xff]
    %v54 = vld [vmem:[%s2 + $0x8] sm:$0xff]
    %vm55 = vcmask 130048
    %v57 = vsel %vm55, %v45, 0
    %v60 = vsel %vm55, %v46, 0
    %v63 = vsel %vm55, %v47, 0
    %v66 = vsel %vm55, %v48, 0
    %68 = vmatpush.msra.mxu0 0.0
    %69 = vmatpush.msra.mxu0 0.0
    %70 = vmatpush.msra.mxu0 0.0
    %71 = vmatpush.msra.mxu0 0.0
    %72 = vmatpush.msra.mxu0 0.0
    %73 = vmatpush.msra.mxu0 0.0
    %74 = vmatpush.msra.mxu0 0.0
    %75 = vmatpush.msra.mxu0 0.0
    %76 = vmatpush.msra.mxu0 0.0
    %77 = vmatpush.msra.mxu0 0.0
    %78 = vmatpush.msra.mxu0 0.0
    %79 = vmatpush.msra.mxu0 0.0
    %80 = vmatpush.msra.mxu0 0.0
    %81 = vmatpush.msra.mxu0 0.0
    %82 = vmatpush.msra.mxu0 %v54
    %83 = vmatpush.msra.mxu0 %v53
    %84 = vmatmul.f32.gmra.mxu0 %v57
    %v85 = vpop.f32.mrf.mxu0
    %v86 = vadd.f32 0.0, %v85
    %87 = vmatmul.f32.gmra.mxu0 %v60
    %v88 = vpop.f32.mrf.mxu0
    %v89 = vadd.f32 0.0, %v88
    %90 = vmatmul.f32.gmra.mxu0 %v63
    %v91 = vpop.f32.mrf.mxu0
    %v92 = vadd.f32 0.0, %v91
    %93 = vmatmul.f32.gmra.mxu0 %v66
    %v94 = vpop.f32.mrf.mxu0
    %v95 = vadd.f32 0.0, %v94
    %96 = vdwg.mxu0
    %v97 = vld [vmem:[%s3] sm:$0xff]
    %v98 = vld [vmem:[%s3 + $0x8] sm:$0xff]
    %v99 = vld [vmem:[%s3 + $0x10] sm:$0xff]
    %v100 = vld [vmem:[%s3 + $0x18] sm:$0xff]
    %vm101 = vcmask 261120
    %v103 = vsel %vm101, %v86, 0
    %v106 = vsel %vm101, %v89, 0
    %v109 = vsel %vm101, %v92, 0
    %v112 = vsel %vm101, %v95, 0
    %114 = vmatpush.msra.mxu0 0.0
    %115 = vmatpush.msra.mxu0 0.0
    %116 = vmatpush.msra.mxu0 0.0
    %117 = vmatpush.msra.mxu0 0.0
    %118 = vmatpush.msra.mxu0 0.0
    %119 = vmatpush.msra.mxu0 0.0
    %120 = vmatpush.msra.mxu0 0.0
    %121 = vmatpush.msra.mxu0 0.0
    %122 = vmatpush.msra.mxu0 0.0
    %123 = vmatpush.msra.mxu0 0.0
    %124 = vmatpush.msra.mxu0 0.0
    %125 = vmatpush.msra.mxu0 0.0
    %126 = vmatpush.msra.mxu0 %v100
    %127 = vmatpush.msra.mxu0 %v99
    %128 = vmatpush.msra.mxu0 %v98
    %129 = vmatpush.msra.mxu0 %v97
    %130 = vmatmul.f32.gmra.mxu0 %v103
    %v131 = vpop.f32.mrf.mxu0
    %v132 = vadd.f32 0.0, %v131
    %133 = vmatmul.f32.gmra.mxu0 %v106
    %v134 = vpop.f32.mrf.mxu0
    %v135 = vadd.f32 0.0, %v134
    %136 = vmatmul.f32.gmra.mxu0 %v109
    %v137 = vpop.f32.mrf.mxu0
    %v138 = vadd.f32 0.0, %v137
    %139 = vmatmul.f32.gmra.mxu0 %v112
    %v140 = vpop.f32.mrf.mxu0
    %v141 = vadd.f32 0.0, %v140
    %142 = vdwg.mxu0
    %v143 = vmax.f32 %v132, 0.0
    %v144 = vmax.f32 %v135, 0.0
    %v145 = vmax.f32 %v138, 0.0
    %v146 = vmax.f32 %v141, 0.0
    %vm147 = vcmp.ne.f32.partialorder %v132, %v132
    %vm148 = vcmp.ne.f32.partialorder %v135, %v135
    %vm149 = vcmp.ne.f32.partialorder %v138, %v138
    %vm150 = vcmp.ne.f32.partialorder %v141, %v141
    %v151 = vadd.f32 %v132, 0.0
    %v152 = vadd.f32 %v135, 0.0
    %v153 = vadd.f32 %v138, 0.0
    %v154 = vadd.f32 %v141, 0.0
    %v155 = vand.u32 2147483647, %v132
    %v156 = vand.u32 2147483647, %v135
    %v157 = vand.u32 2147483647, %v138
    %v158 = vand.u32 2147483647, %v141
    %v159 = vsub.f32 0.0, %v155
    %v160 = vsub.f32 0.0, %v156
    %v161 = vsub.f32 0.0, %v157
    %v162 = vsub.f32 0.0, %v158
    %v163 = vmul.f32 %v159, 1.442695
    %v164 = vpow.pop %v163
    %v165 = vmul.f32 %v160, 1.442695
    %v166 = vpow.pop %v165
    %v167 = vmul.f32 %v161, 1.442695
    %v168 = vpow.pop %v167
    %v169 = vmul.f32 %v162, 1.442695
    %v170 = vpow.pop %v169
    %v171 = vadd.f32 %v164, 1.0
    %v172 = vlog2.pop %v171
    %v173 = vmul.f32 %v172, 0.6931472
    %v174 = vmul.f32 -0.5, %v164
    %v175 = vadd.f32 %v174, 1.0
    %v176 = vmul.f32 %v175, %v164
    %v177 = vand.u32 2147483647, %v164
    %vm178 = vcmp.lt.f32.partialorder %v177, 0.0004427343
    %v179 = vsel %vm178, %v176, %v173
    %v180 = vadd.f32 %v166, 1.0
    %v181 = vlog2.pop %v180
    %v182 = vmul.f32 %v181, 0.6931472
    %v183 = vmul.f32 -0.5, %v166
    %v184 = vadd.f32 %v183, 1.0
    %v185 = vmul.f32 %v184, %v166
    %v186 = vand.u32 2147483647, %v166
    %vm187 = vcmp.lt.f32.partialorder %v186, 0.0004427343
    %v188 = vsel %vm187, %v185, %v182
    %v189 = vadd.f32 %v168, 1.0
    %v190 = vlog2.pop %v189
    %v191 = vmul.f32 %v190, 0.6931472
    %v192 = vmul.f32 -0.5, %v168
    %v193 = vadd.f32 %v192, 1.0
    %v194 = vmul.f32 %v193, %v168
    %v195 = vand.u32 2147483647, %v168
    %vm196 = vcmp.lt.f32.partialorder %v195, 0.0004427343
    %v197 = vsel %vm196, %v194, %v191
    %v198 = vadd.f32 %v170, 1.0
    %v199 = vlog2.pop %v198
    %v200 = vmul.f32 %v199, 0.6931472
    %v201 = vmul.f32 -0.5, %v170
    %v202 = vadd.f32 %v201, 1.0
    %v203 = vmul.f32 %v202, %v170
    %v204 = vand.u32 2147483647, %v170
    %vm205 = vcmp.lt.f32.partialorder %v204, 0.0004427343
    %v206 = vsel %vm205, %v203, %v200
    %v207 = vadd.f32 %v143, %v179
    %v208 = vadd.f32 %v144, %v188
    %v209 = vadd.f32 %v145, %v197
    %v210 = vadd.f32 %v146, %v206
    %v211 = vsel %vm147, %v151, %v207
    %v212 = vsel %vm148, %v152, %v208
    %v213 = vsel %vm149, %v153, %v209
    %v214 = vsel %vm150, %v154, %v210
    %v215 = vtanh.pop %v211
    %v216 = vtanh.pop %v212
    %v217 = vtanh.pop %v213
    %v218 = vtanh.pop %v214
    %v219 = vmul.f32 %v132, %v215
    %v220 = vmul.f32 %v135, %v216
    %v221 = vmul.f32 %v138, %v217
    %v222 = vmul.f32 %v141, %v218
    %s223 = scalar_lea.vmem %s3, 32
    %v224 = vld [vmem:[%s223] sm:$0xff]
    %v225 = vld [vmem:[%s223 + $0x8] sm:$0xff]
    %v226 = vld [vmem:[%s223 + $0x10] sm:$0xff]
    %v227 = vld [vmem:[%s223 + $0x18] sm:$0xff]
    %v229 = vsel %vm101, %v219, 0
    %v232 = vsel %vm101, %v220, 0
    %v235 = vsel %vm101, %v221, 0
    %v238 = vsel %vm101, %v222, 0
    %240 = vmatpush.msra.mxu0 0.0
    %241 = vmatpush.msra.mxu0 0.0
    %242 = vmatpush.msra.mxu0 0.0
    %243 = vmatpush.msra.mxu0 0.0
    %244 = vmatpush.msra.mxu0 0.0
    %245 = vmatpush.msra.mxu0 0.0
    %246 = vmatpush.msra.mxu0 0.0
    %247 = vmatpush.msra.mxu0 0.0
    %248 = vmatpush.msra.mxu0 0.0
    %249 = vmatpush.msra.mxu0 0.0
    %250 = vmatpush.msra.mxu0 0.0
    %251 = vmatpush.msra.mxu0 0.0
    %252 = vmatpush.msra.mxu0 %v227
    %253 = vmatpush.msra.mxu0 %v226
    %254 = vmatpush.msra.mxu0 %v225
    %255 = vmatpush.msra.mxu0 %v224
    %256 = vmatmul.f32.gmra.mxu0 %v229
    %v257 = vpop.f32.mrf.mxu0
    %v258 = vadd.f32 0.0, %v257
    %259 = vmatmul.f32.gmra.mxu0 %v232
    %v260 = vpop.f32.mrf.mxu0
    %v261 = vadd.f32 0.0, %v260
    %262 = vmatmul.f32.gmra.mxu0 %v235
    %v263 = vpop.f32.mrf.mxu0
    %v264 = vadd.f32 0.0, %v263
    %265 = vmatmul.f32.gmra.mxu0 %v238
    %v266 = vpop.f32.mrf.mxu0
    %v267 = vadd.f32 0.0, %v266
    %268 = vdwg.mxu0
    %v269 = vmax.f32 %v258, 0.0
    %v270 = vmax.f32 %v261, 0.0
    %v271 = vmax.f32 %v264, 0.0
    %v272 = vmax.f32 %v267, 0.0
    %vm273 = vcmp.ne.f32.partialorder %v258, %v258
    %vm274 = vcmp.ne.f32.partialorder %v261, %v261
    %vm275 = vcmp.ne.f32.partialorder %v264, %v264
    %vm276 = vcmp.ne.f32.partialorder %v267, %v267
    %v277 = vadd.f32 %v258, 0.0
    %v278 = vadd.f32 %v261, 0.0
    %v279 = vadd.f32 %v264, 0.0
    %v280 = vadd.f32 %v267, 0.0
    %v281 = vand.u32 2147483647, %v258
    %v282 = vand.u32 2147483647, %v261
    %v283 = vand.u32 2147483647, %v264
    %v284 = vand.u32 2147483647, %v267
    %v285 = vsub.f32 0.0, %v281
    %v286 = vsub.f32 0.0, %v282
    %v287 = vsub.f32 0.0, %v283
    %v288 = vsub.f32 0.0, %v284
    %v289 = vmul.f32 %v285, 1.442695
    %v290 = vpow.pop %v289
    %v291 = vmul.f32 %v286, 1.442695
    %v292 = vpow.pop %v291
    %v293 = vmul.f32 %v287, 1.442695
    %v294 = vpow.pop %v293
    %v295 = vmul.f32 %v288, 1.442695
    %v296 = vpow.pop %v295
    %v297 = vadd.f32 %v290, 1.0
    %v298 = vlog2.pop %v297
    %v299 = vmul.f32 %v298, 0.6931472
    %v300 = vmul.f32 -0.5, %v290
    %v301 = vadd.f32 %v300, 1.0
    %v302 = vmul.f32 %v301, %v290
    %v303 = vand.u32 2147483647, %v290
    %vm304 = vcmp.lt.f32.partialorder %v303, 0.0004427343
    %v305 = vsel %vm304, %v302, %v299
    %v306 = vadd.f32 %v292, 1.0
    %v307 = vlog2.pop %v306
    %v308 = vmul.f32 %v307, 0.6931472
    %v309 = vmul.f32 -0.5, %v292
    %v310 = vadd.f32 %v309, 1.0
    %v311 = vmul.f32 %v310, %v292
    %v312 = vand.u32 2147483647, %v292
    %vm313 = vcmp.lt.f32.partialorder %v312, 0.0004427343
    %v314 = vsel %vm313, %v311, %v308
    %v315 = vadd.f32 %v294, 1.0
    %v316 = vlog2.pop %v315
    %v317 = vmul.f32 %v316, 0.6931472
    %v318 = vmul.f32 -0.5, %v294
    %v319 = vadd.f32 %v318, 1.0
    %v320 = vmul.f32 %v319, %v294
    %v321 = vand.u32 2147483647, %v294
    %vm322 = vcmp.lt.f32.partialorder %v321, 0.0004427343
    %v323 = vsel %vm322, %v320, %v317
    %v324 = vadd.f32 %v296, 1.0
    %v325 = vlog2.pop %v324
    %v326 = vmul.f32 %v325, 0.6931472
    %v327 = vmul.f32 -0.5, %v296
    %v328 = vadd.f32 %v327, 1.0
    %v329 = vmul.f32 %v328, %v296
    %v330 = vand.u32 2147483647, %v296
    %vm331 = vcmp.lt.f32.partialorder %v330, 0.0004427343
    %v332 = vsel %vm331, %v329, %v326
    %v333 = vadd.f32 %v269, %v305
    %v334 = vadd.f32 %v270, %v314
    %v335 = vadd.f32 %v271, %v323
    %v336 = vadd.f32 %v272, %v332
    %v337 = vsel %vm273, %v277, %v333
    %v338 = vsel %vm274, %v278, %v334
    %v339 = vsel %vm275, %v279, %v335
    %v340 = vsel %vm276, %v280, %v336
    %v341 = vtanh.pop %v337
    %v342 = vtanh.pop %v338
    %v343 = vtanh.pop %v339
    %v344 = vtanh.pop %v340
    %v345 = vmul.f32 %v258, %v341
    %v346 = vmul.f32 %v261, %v342
    %v347 = vmul.f32 %v264, %v343
    %v348 = vmul.f32 %v267, %v344
    %v349 = vlaneseq
    %v350 = vshrl.u32 %v349, 7
    %v351 = vadd.s32 %v350, 8
    %v352 = vadd.s32 %v350, 16
    %v353 = vadd.s32 %v350, 24
    %vm354 = vcmp.lt.s32.totalorder %v350, 0
    %v355 = vsub.s32 0, %v350
    %v356 = vsel %vm354, %v355, %v350
    %v357 = vshrl.u32 %v356, 4
    %v358 = vand.u32 %v356, 15
    %v359 = vsub.s32 0, %v358
    %v360 = vsel %vm354, %v359, %v358
    %vm361 = vcmp.lt.s32.totalorder %v351, 0
    %v362 = vsub.s32 0, %v351
    %v363 = vsel %vm361, %v362, %v351
    %v364 = vshrl.u32 %v363, 4
    %v365 = vand.u32 %v363, 15
    %v366 = vsub.s32 0, %v365
    %v367 = vsel %vm361, %v366, %v365
    %vm368 = vcmp.lt.s32.totalorder %v352, 0
    %v369 = vsub.s32 0, %v352
    %v370 = vsel %vm368, %v369, %v352
    %v371 = vshrl.u32 %v370, 4
    %v372 = vand.u32 %v370, 15
    %v373 = vsub.s32 0, %v372
    %v374 = vsel %vm368, %v373, %v372
    %vm375 = vcmp.lt.s32.totalorder %v353, 0
    %v376 = vsub.s32 0, %v353
    %v377 = vsel %vm375, %v376, %v353
    %v378 = vshrl.u32 %v377, 4
    %v379 = vand.u32 %v377, 15
    %v380 = vsub.s32 0, %v379
    %v381 = vsel %vm375, %v380, %v379
    %vm382 = vcmp.ne.s32.totalorder %v360, 0
    %vm383 = vcmp.ne.s32.totalorder %v367, 0
    %vm384 = vcmp.ne.s32.totalorder %v374, 0
    %vm385 = vcmp.ne.s32.totalorder %v381, 0
    %vm386 = vcmp.lt.s32.totalorder %v360, 0
    %vm387 = vcmp.lt.s32.totalorder %v367, 0
    %vm388 = vcmp.lt.s32.totalorder %v374, 0
    %vm389 = vcmp.lt.s32.totalorder %v381, 0
    %vm390 = vmand %vm386, %vm382
    %vm391 = vmand %vm387, %vm383
    %vm392 = vmand %vm388, %vm384
    %vm393 = vmand %vm389, %vm385
    %v394 = vadd.s32 %v360, 16
    %v395 = vadd.s32 %v367, 16
    %v396 = vadd.s32 %v374, 16
    %v397 = vadd.s32 %v381, 16
    %v398 = vsel %vm390, %v394, %v360
    %v399 = vsel %vm391, %v395, %v367
    %v400 = vsel %vm392, %v396, %v374
    %v401 = vsel %vm393, %v397, %v381
    %v402 = vrot.slane %v345, 6
    %v403 = vrot.slane %v346, 6
    %v404 = vrot.slane %v347, 6
    %v405 = vrot.slane %v348, 6
    %vm406 = vcmp.lt.s32.totalorder %v350, 2
    %v407 = vsel %vm406, %v404, %v405
    %v408 = vsel %vm406, %v403, %v404
    %v409 = vsel %vm406, %v402, %v403
    %v410 = vsel %vm406, %v405, %v402
    %v411 = vadd.s32 %v398, 4294967294
    %v412 = vadd.s32 %v399, 4294967294
    %v413 = vadd.s32 %v400, 4294967294
    %v414 = vadd.s32 %v401, 4294967294
    %vm415 = vcmp.ge.s32.totalorder %v411, 0
    %vm416 = vcmp.ge.s32.totalorder %v412, 0
    %vm417 = vcmp.ge.s32.totalorder %v413, 0
    %vm418 = vcmp.ge.s32.totalorder %v414, 0
    %vm419 = vcmp.lt.s32.totalorder %v411, 16
    %vm420 = vcmp.lt.s32.totalorder %v412, 16
    %vm421 = vcmp.lt.s32.totalorder %v413, 16
    %vm422 = vcmp.lt.s32.totalorder %v414, 16
    %vm423 = vmand %vm415, %vm419
    %vm424 = vmand %vm416, %vm420
    %vm425 = vmand %vm417, %vm421
    %vm426 = vmand %vm418, %vm422
    %v427 = vsel %vm423, %v410, 0.0
    %v428 = vsel %vm424, %v409, 0.0
    %v429 = vsel %vm425, %v408, 0.0
    %v430 = vsel %vm426, %v407, 0.0
    %v431 = vrot.slane %v345, 7
    %v432 = vrot.slane %v346, 7
    %v433 = vrot.slane %v347, 7
    %v434 = vrot.slane %v348, 7
    %vm435 = vcmp.lt.s32.totalorder %v350, 1
    %v436 = vsel %vm435, %v433, %v434
    %v437 = vsel %vm435, %v432, %v433
    %v438 = vsel %vm435, %v431, %v432
    %v439 = vsel %vm435, %v434, %v431
    %v440 = vadd.s32 %v398, 4294967295
    %v441 = vadd.s32 %v399, 4294967295
    %v442 = vadd.s32 %v400, 4294967295
    %v443 = vadd.s32 %v401, 4294967295
    %vm444 = vcmp.ge.s32.totalorder %v440, 0
    %vm445 = vcmp.ge.s32.totalorder %v441, 0
    %vm446 = vcmp.ge.s32.totalorder %v442, 0
    %vm447 = vcmp.ge.s32.totalorder %v443, 0
    %vm448 = vcmp.lt.s32.totalorder %v440, 16
    %vm449 = vcmp.lt.s32.totalorder %v441, 16
    %vm450 = vcmp.lt.s32.totalorder %v442, 16
    %vm451 = vcmp.lt.s32.totalorder %v443, 16
    %vm452 = vmand %vm444, %vm448
    %vm453 = vmand %vm445, %vm449
    %vm454 = vmand %vm446, %vm450
    %vm455 = vmand %vm447, %vm451
    %v456 = vsel %vm452, %v439, 0.0
    %v457 = vsel %vm453, %v438, 0.0
    %v458 = vsel %vm454, %v437, 0.0
    %v459 = vsel %vm455, %v436, 0.0
    %vm460 = vcmp.ge.s32.totalorder %v398, 0
    %vm461 = vcmp.ge.s32.totalorder %v399, 0
    %vm462 = vcmp.ge.s32.totalorder %v400, 0
    %vm463 = vcmp.ge.s32.totalorder %v401, 0
    %vm464 = vcmp.lt.s32.totalorder %v398, 16
    %vm465 = vcmp.lt.s32.totalorder %v399, 16
    %vm466 = vcmp.lt.s32.totalorder %v400, 16
    %vm467 = vcmp.lt.s32.totalorder %v401, 16
    %vm468 = vmand %vm460, %vm464
    %vm469 = vmand %vm461, %vm465
    %vm470 = vmand %vm462, %vm466
    %vm471 = vmand %vm463, %vm467
    %v472 = vsel %vm468, %v345, 0.0
    %v473 = vsel %vm469, %v346, 0.0
    %v474 = vsel %vm470, %v347, 0.0
    %v475 = vsel %vm471, %v348, 0.0
    %v476 = vrot.slane %v345, 1
    %v477 = vrot.slane %v346, 1
    %v478 = vrot.slane %v347, 1
    %v479 = vrot.slane %v348, 1
    %vm480 = vcmp.lt.s32.totalorder %v350, 7
    %v481 = vsel %vm480, %v478, %v479
    %v482 = vsel %vm480, %v477, %v478
    %v483 = vsel %vm480, %v476, %v477
    %v484 = vsel %vm480, %v479, %v476
    %v485 = vadd.s32 %v398, 1
    %v486 = vadd.s32 %v399, 1
    %v487 = vadd.s32 %v400, 1
    %v488 = vadd.s32 %v401, 1
    %vm489 = vcmp.ge.s32.totalorder %v485, 0
    %vm490 = vcmp.ge.s32.totalorder %v486, 0
    %vm491 = vcmp.ge.s32.totalorder %v487, 0
    %vm492 = vcmp.ge.s32.totalorder %v488, 0
    %vm493 = vcmp.lt.s32.totalorder %v485, 16
    %vm494 = vcmp.lt.s32.totalorder %v486, 16
    %vm495 = vcmp.lt.s32.totalorder %v487, 16
    %vm496 = vcmp.lt.s32.totalorder %v488, 16
    %vm497 = vmand %vm489, %vm493
    %vm498 = vmand %vm490, %vm494
    %vm499 = vmand %vm491, %vm495
    %vm500 = vmand %vm492, %vm496
    %v501 = vsel %vm497, %v483, 0.0
    %v502 = vsel %vm498, %v482, 0.0
    %v503 = vsel %vm499, %v481, 0.0
    %v504 = vsel %vm500, %v484, 0.0
    %v505 = vrot.slane %v345, 2
    %v506 = vrot.slane %v346, 2
    %v507 = vrot.slane %v347, 2
    %v508 = vrot.slane %v348, 2
    %vm509 = vcmp.lt.s32.totalorder %v350, 6
    %v510 = vsel %vm509, %v507, %v508
    %v511 = vsel %vm509, %v506, %v507
    %v512 = vsel %vm509, %v505, %v506
    %v513 = vsel %vm509, %v508, %v505
    %v514 = vadd.s32 %v398, 2
    %v515 = vadd.s32 %v399, 2
    %v516 = vadd.s32 %v400, 2
    %v517 = vadd.s32 %v401, 2
    %vm518 = vcmp.ge.s32.totalorder %v514, 0
    %vm519 = vcmp.ge.s32.totalorder %v515, 0
    %vm520 = vcmp.ge.s32.totalorder %v516, 0
    %vm521 = vcmp.ge.s32.totalorder %v517, 0
    %vm522 = vcmp.lt.s32.totalorder %v514, 16
    %vm523 = vcmp.lt.s32.totalorder %v515, 16
    %vm524 = vcmp.lt.s32.totalorder %v516, 16
    %vm525 = vcmp.lt.s32.totalorder %v517, 16
    %vm526 = vmand %vm518, %vm522
    %vm527 = vmand %vm519, %vm523
    %vm528 = vmand %vm520, %vm524
    %vm529 = vmand %vm521, %vm525
    %v530 = vsel %vm526, %v512, 0.0
    %v531 = vsel %vm527, %v511, 0.0
    %v532 = vsel %vm528, %v510, 0.0
    %v533 = vsel %vm529, %v513, 0.0
    %538 = vrot.lane.b32.xlu0 %v456, 32
    %v539 = vpop.permute.xlu0 %538
    %540 = vrot.lane.b32.xlu0 %v457, 32
    %v541 = vpop.permute.xlu0 %540
    %542 = vrot.lane.b32.xlu0 %v458, 32
    %v543 = vpop.permute.xlu0 %542
    %544 = vrot.lane.b32.xlu0 %v459, 32
    %v545 = vpop.permute.xlu0 %544
    %554 = vrot.lane.b32.xlu0 %v472, 64
    %v555 = vpop.permute.xlu0 %554
    %556 = vrot.lane.b32.xlu0 %v473, 64
    %v557 = vpop.permute.xlu0 %556
    %558 = vrot.lane.b32.xlu0 %v474, 64
    %v559 = vpop.permute.xlu0 %558
    %560 = vrot.lane.b32.xlu0 %v475, 64
    %v561 = vpop.permute.xlu0 %560
    %570 = vrot.lane.b32.xlu0 %v501, 96
    %v571 = vpop.permute.xlu0 %570
    %572 = vrot.lane.b32.xlu0 %v502, 96
    %v573 = vpop.permute.xlu0 %572
    %574 = vrot.lane.b32.xlu0 %v503, 96
    %v575 = vpop.permute.xlu0 %574
    %576 = vrot.lane.b32.xlu0 %v504, 96
    %v577 = vpop.permute.xlu0 %576
    %v582 = vsel %vm101, %v427, %v539
    %v583 = vsel %vm101, %v428, %v541
    %v584 = vsel %vm101, %v429, %v543
    %v585 = vsel %vm101, %v430, %v545
    %vm586 = vcmask 523264
    %v587 = vsel %vm586, %v582, %v555
    %v588 = vsel %vm586, %v583, %v557
    %v589 = vsel %vm586, %v584, %v559
    %v590 = vsel %vm586, %v585, %v561
    %vm591 = vcmask 785408
    %v592 = vsel %vm591, %v587, %v571
    %v593 = vsel %vm591, %v588, %v573
    %v594 = vsel %vm591, %v589, %v575
    %v595 = vsel %vm591, %v590, %v577
    %v596 = vld [vmem:[%s4] sm:$0xff]
    %v597 = vld [vmem:[%s4 + $0x8] sm:$0xff]
    %v598 = vld [vmem:[%s4 + $0x10] sm:$0xff]
    %v599 = vld [vmem:[%s4 + $0x18] sm:$0xff]
    %v600 = vld [vmem:[%s4 + $0x20] sm:$0xff]
    %v601 = vld [vmem:[%s4 + $0x28] sm:$0xff]
    %v602 = vld [vmem:[%s4 + $0x30] sm:$0xff]
    %v603 = vld [vmem:[%s4 + $0x38] sm:$0xff]
    %v604 = vld [vmem:[%s4 + $0x40] sm:$0xff]
    %v605 = vld [vmem:[%s4 + $0x48] sm:$0xff]
    %v606 = vld [vmem:[%s4 + $0x50] sm:$0xff]
    %v607 = vld [vmem:[%s4 + $0x58] sm:$0xff]
    %v608 = vld [vmem:[%s4 + $0x60] sm:$0xff]
    %v609 = vld [vmem:[%s4 + $0x68] sm:$0xff]
    %v610 = vld [vmem:[%s4 + $0x70] sm:$0xff]
    %v611 = vld [vmem:[%s4 + $0x78] sm:$0xff]
    %v612 = vld [vmem:[%s4 + $0x80] sm:$0xff]
    %v613 = vld [vmem:[%s4 + $0x88] sm:$0xff]
    %v614 = vld [vmem:[%s4 + $0x90] sm:$0xff]
    %v615 = vld [vmem:[%s4 + $0x98] sm:$0xff]
    %v616 = vld [vmem:[%s5] sm:$0x1]
    %v618 = vperm.slane %v616, 0
    %v621 = vsel %vm101, %v530, 0
    %v624 = vsel %vm101, %v531, 0
    %v627 = vsel %vm101, %v532, 0
    %v630 = vsel %vm101, %v533, 0
    %632 = vmatpush.msra.mxu0 %v611
    %633 = vmatpush.msra.mxu0 %v610
    %634 = vmatpush.msra.mxu0 %v609
    %635 = vmatpush.msra.mxu0 %v608
    %636 = vmatpush.msra.mxu0 %v607
    %637 = vmatpush.msra.mxu0 %v606
    %638 = vmatpush.msra.mxu0 %v605
    %639 = vmatpush.msra.mxu0 %v604
    %640 = vmatpush.msra.mxu0 %v603
    %641 = vmatpush.msra.mxu0 %v602
    %642 = vmatpush.msra.mxu0 %v601
    %643 = vmatpush.msra.mxu0 %v600
    %644 = vmatpush.msra.mxu0 %v599
    %645 = vmatpush.msra.mxu0 %v598
    %646 = vmatpush.msra.mxu0 %v597
    %647 = vmatpush.msra.mxu0 %v596
    %648 = vmatmul.f32.gmra.mxu0 %v592
    %v649 = vpop.f32.mrf.mxu0
    %v650 = vadd.f32 %v618, %v649
    %651 = vmatmul.f32.gmra.mxu0 %v593
    %v652 = vpop.f32.mrf.mxu0
    %v653 = vadd.f32 %v618, %v652
    %654 = vmatmul.f32.gmra.mxu0 %v594
    %v655 = vpop.f32.mrf.mxu0
    %v656 = vadd.f32 %v618, %v655
    %657 = vmatmul.f32.gmra.mxu0 %v595
    %v658 = vpop.f32.mrf.mxu0
    %v659 = vadd.f32 %v618, %v658
    %660 = vdwg.mxu0
    %661 = vmatpush.msra.mxu0 0.0
    %662 = vmatpush.msra.mxu0 0.0
    %663 = vmatpush.msra.mxu0 0.0
    %664 = vmatpush.msra.mxu0 0.0
    %665 = vmatpush.msra.mxu0 0.0
    %666 = vmatpush.msra.mxu0 0.0
    %667 = vmatpush.msra.mxu0 0.0
    %668 = vmatpush.msra.mxu0 0.0
    %669 = vmatpush.msra.mxu0 0.0
    %670 = vmatpush.msra.mxu0 0.0
    %671 = vmatpush.msra.mxu0 0.0
    %672 = vmatpush.msra.mxu0 0.0
    %673 = vmatpush.msra.mxu0 %v615
    %674 = vmatpush.msra.mxu0 %v614
    %675 = vmatpush.msra.mxu0 %v613
    %676 = vmatpush.msra.mxu0 %v612
    %677 = vmatmul.f32.gmra.mxu0 %v621
    %v678 = vpop.f32.mrf.mxu0
    %v679 = vadd.f32 %v650, %v678
    %680 = vmatmul.f32.gmra.mxu0 %v624
    %v681 = vpop.f32.mrf.mxu0
    %v682 = vadd.f32 %v653, %v681
    %683 = vmatmul.f32.gmra.mxu0 %v627
    %v684 = vpop.f32.mrf.mxu0
    %v685 = vadd.f32 %v656, %v684
    %686 = vmatmul.f32.gmra.mxu0 %v630
    %v687 = vpop.f32.mrf.mxu0
    %v688 = vadd.f32 %v659, %v687
    %689 = vdwg.mxu0
    %v690 = vmax.f32 %v679, 0.0
    %v691 = vmax.f32 %v682, 0.0
    %v692 = vmax.f32 %v685, 0.0
    %v693 = vmax.f32 %v688, 0.0
    %vm694 = vcmp.ne.f32.partialorder %v679, %v679
    %vm695 = vcmp.ne.f32.partialorder %v682, %v682
    %vm696 = vcmp.ne.f32.partialorder %v685, %v685
    %vm697 = vcmp.ne.f32.partialorder %v688, %v688
    %v698 = vadd.f32 %v679, 0.0
    %v699 = vadd.f32 %v682, 0.0
    %v700 = vadd.f32 %v685, 0.0
    %v701 = vadd.f32 %v688, 0.0
    %v702 = vand.u32 2147483647, %v679
    %v703 = vand.u32 2147483647, %v682
    %v704 = vand.u32 2147483647, %v685
    %v705 = vand.u32 2147483647, %v688
    %v706 = vsub.f32 0.0, %v702
    %v707 = vsub.f32 0.0, %v703
    %v708 = vsub.f32 0.0, %v704
    %v709 = vsub.f32 0.0, %v705
    %v710 = vmul.f32 %v706, 1.442695
    %v711 = vpow.pop %v710
    %v712 = vmul.f32 %v707, 1.442695
    %v713 = vpow.pop %v712
    %v714 = vmul.f32 %v708, 1.442695
    %v715 = vpow.pop %v714
    %v716 = vmul.f32 %v709, 1.442695
    %v717 = vpow.pop %v716
    %v718 = vadd.f32 %v711, 1.0
    %v719 = vlog2.pop %v718
    %v720 = vmul.f32 %v719, 0.6931472
    %v721 = vmul.f32 -0.5, %v711
    %v722 = vadd.f32 %v721, 1.0
    %v723 = vmul.f32 %v722, %v711
    %v724 = vand.u32 2147483647, %v711
    %vm725 = vcmp.lt.f32.partialorder %v724, 0.0004427343
    %v726 = vsel %vm725, %v723, %v720
    %v727 = vadd.f32 %v713, 1.0
    %v728 = vlog2.pop %v727
    %v729 = vmul.f32 %v728, 0.6931472
    %v730 = vmul.f32 -0.5, %v713
    %v731 = vadd.f32 %v730, 1.0
    %v732 = vmul.f32 %v731, %v713
    %v733 = vand.u32 2147483647, %v713
    %vm734 = vcmp.lt.f32.partialorder %v733, 0.0004427343
    %v735 = vsel %vm734, %v732, %v729
    %v736 = vadd.f32 %v715, 1.0
    %v737 = vlog2.pop %v736
    %v738 = vmul.f32 %v737, 0.6931472
    %v739 = vmul.f32 -0.5, %v715
    %v740 = vadd.f32 %v739, 1.0
    %v741 = vmul.f32 %v740, %v715
    %v742 = vand.u32 2147483647, %v715
    %vm743 = vcmp.lt.f32.partialorder %v742, 0.0004427343
    %v744 = vsel %vm743, %v741, %v738
    %v745 = vadd.f32 %v717, 1.0
    %v746 = vlog2.pop %v745
    %v747 = vmul.f32 %v746, 0.6931472
    %v748 = vmul.f32 -0.5, %v717
    %v749 = vadd.f32 %v748, 1.0
    %v750 = vmul.f32 %v749, %v717
    %v751 = vand.u32 2147483647, %v717
    %vm752 = vcmp.lt.f32.partialorder %v751, 0.0004427343
    %v753 = vsel %vm752, %v750, %v747
    %v754 = vadd.f32 %v690, %v726
    %v755 = vadd.f32 %v691, %v735
    %v756 = vadd.f32 %v692, %v744
    %v757 = vadd.f32 %v693, %v753
    %v758 = vsel %vm694, %v698, %v754
    %v759 = vsel %vm695, %v699, %v755
    %v760 = vsel %vm696, %v700, %v756
    %v761 = vsel %vm697, %v701, %v757
    %v762 = vtanh.pop %v758
    %v763 = vtanh.pop %v759
    %v764 = vtanh.pop %v760
    %v765 = vtanh.pop %v761
    %v766 = vmul.f32 %v679, %v762
    %v767 = vmul.f32 %v682, %v763
    %v768 = vmul.f32 %v685, %v764
    %v769 = vmul.f32 %v688, %v765
    %v770 = vxor.u32 %v766, 2147483648
    %v771 = vxor.u32 %v767, 2147483648
    %v772 = vxor.u32 %v768, 2147483648
    %v773 = vxor.u32 %v769, 2147483648
    %v774 = vmul.f32 %v770, 1.442695
    %v775 = vpow.pop %v774
    %v776 = vmul.f32 %v771, 1.442695
    %v777 = vpow.pop %v776
    %v778 = vmul.f32 %v772, 1.442695
    %v779 = vpow.pop %v778
    %v780 = vmul.f32 %v773, 1.442695
    %v781 = vpow.pop %v780
    %v782 = vadd.f32 %v775, 1.0
    %v783 = vadd.f32 %v777, 1.0
    %v784 = vadd.f32 %v779, 1.0
    %v785 = vadd.f32 %v781, 1.0
    %v786 = vrcp.pop %v782
    %v787 = vmul.f32 %v782, %v786
    %v788 = vsub.f32 1.0, %v787
    %v789 = vmul.f32 %v786, %v788
    %v790 = vadd.f32 %v786, %v789
    %vm791 = vweird.f32 %v782
    %vm792 = vweird.f32 %v786
    %vm793 = vmor %vm791, %vm792
    %v794 = vsel %vm793, %v786, %v790
    %v795 = vand.u32 2147483647, %v782
    %vm796 = vcmp.eq.f32.partialorder %v795, 8.507059e+37
    %v797 = vand.u32 %v782, 2147483648
    %v798 = vor.u32 1.1754944e-38, %v797
    %v799 = vsel %vm796, %v798, %v794
    %v800 = vmul.f32 1.0, %v799
    %v801 = vrcp.pop %v783
    %v802 = vmul.f32 %v783, %v801
    %v803 = vsub.f32 1.0, %v802
    %v804 = vmul.f32 %v801, %v803
    %v805 = vadd.f32 %v801, %v804
    %vm806 = vweird.f32 %v783
    %vm807 = vweird.f32 %v801
    %vm808 = vmor %vm806, %vm807
    %v809 = vsel %vm808, %v801, %v805
    %v810 = vand.u32 2147483647, %v783
    %vm811 = vcmp.eq.f32.partialorder %v810, 8.507059e+37
    %v812 = vand.u32 %v783, 2147483648
    %v813 = vor.u32 1.1754944e-38, %v812
    %v814 = vsel %vm811, %v813, %v809
    %v815 = vmul.f32 1.0, %v814
    %v816 = vrcp.pop %v784
    %v817 = vmul.f32 %v784, %v816
    %v818 = vsub.f32 1.0, %v817
    %v819 = vmul.f32 %v816, %v818
    %v820 = vadd.f32 %v816, %v819
    %vm821 = vweird.f32 %v784
    %vm822 = vweird.f32 %v816
    %vm823 = vmor %vm821, %vm822
    %v824 = vsel %vm823, %v816, %v820
    %v825 = vand.u32 2147483647, %v784
    %vm826 = vcmp.eq.f32.partialorder %v825, 8.507059e+37
    %v827 = vand.u32 %v784, 2147483648
    %v828 = vor.u32 1.1754944e-38, %v827
    %v829 = vsel %vm826, %v828, %v824
    %v830 = vmul.f32 1.0, %v829
    %v831 = vrcp.pop %v785
    %v832 = vmul.f32 %v785, %v831
    %v833 = vsub.f32 1.0, %v832
    %v834 = vmul.f32 %v831, %v833
    %v835 = vadd.f32 %v831, %v834
    %vm836 = vweird.f32 %v785
    %vm837 = vweird.f32 %v831
    %vm838 = vmor %vm836, %vm837
    %v839 = vsel %vm838, %v831, %v835
    %v840 = vand.u32 2147483647, %v785
    %vm841 = vcmp.eq.f32.partialorder %v840, 8.507059e+37
    %v842 = vand.u32 %v785, 2147483648
    %v843 = vor.u32 1.1754944e-38, %v842
    %v844 = vsel %vm841, %v843, %v839
    %v845 = vmul.f32 1.0, %v844
    %850 = vrot.lane.b32.xlu0 %v800, 96
    %v851 = vpop.permute.xlu0 %850
    %852 = vrot.lane.b32.xlu0 %v815, 96
    %v853 = vpop.permute.xlu0 %852
    %854 = vrot.lane.b32.xlu0 %v830, 96
    %v855 = vpop.permute.xlu0 %854
    %856 = vrot.lane.b32.xlu0 %v845, 96
    %v857 = vpop.permute.xlu0 %856
    %v862 = vmul.f32 %v766, %v851
    %v863 = vmul.f32 %v767, %v853
    %v864 = vmul.f32 %v768, %v855
    %v865 = vmul.f32 %v769, %v857
    %v866 = vadd.f32 %v345, %v862
    %v867 = vadd.f32 %v346, %v863
    %v868 = vadd.f32 %v347, %v864
    %v869 = vadd.f32 %v348, %v865
    %v870 = vrot.slane %v866, 6
    %v871 = vrot.slane %v867, 6
    %v872 = vrot.slane %v868, 6
    %v873 = vrot.slane %v869, 6
    %v874 = vsel %vm406, %v872, %v873
    %v875 = vsel %vm406, %v871, %v872
    %v876 = vsel %vm406, %v870, %v871
    %v877 = vsel %vm406, %v873, %v870
    %v878 = vsel %vm423, %v877, 0.0
    %v879 = vsel %vm424, %v876, 0.0
    %v880 = vsel %vm425, %v875, 0.0
    %v881 = vsel %vm426, %v874, 0.0
    %v882 = vrot.slane %v866, 7
    %v883 = vrot.slane %v867, 7
    %v884 = vrot.slane %v868, 7
    %v885 = vrot.slane %v869, 7
    %v886 = vsel %vm435, %v884, %v885
    %v887 = vsel %vm435, %v883, %v884
    %v888 = vsel %vm435, %v882, %v883
    %v889 = vsel %vm435, %v885, %v882
    %v890 = vsel %vm452, %v889, 0.0
    %v891 = vsel %vm453, %v888, 0.0
    %v892 = vsel %vm454, %v887, 0.0
    %v893 = vsel %vm455, %v886, 0.0
    %v894 = vsel %vm468, %v866, 0.0
    %v895 = vsel %vm469, %v867, 0.0
    %v896 = vsel %vm470, %v868, 0.0
    %v897 = vsel %vm471, %v869, 0.0
    %v898 = vrot.slane %v866, 1
    %v899 = vrot.slane %v867, 1
    %v900 = vrot.slane %v868, 1
    %v901 = vrot.slane %v869, 1
    %v902 = vsel %vm480, %v900, %v901
    %v903 = vsel %vm480, %v899, %v900
    %v904 = vsel %vm480, %v898, %v899
    %v905 = vsel %vm480, %v901, %v898
    %v906 = vsel %vm497, %v904, 0.0
    %v907 = vsel %vm498, %v903, 0.0
    %v908 = vsel %vm499, %v902, 0.0
    %v909 = vsel %vm500, %v905, 0.0
    %v910 = vrot.slane %v866, 2
    %v911 = vrot.slane %v867, 2
    %v912 = vrot.slane %v868, 2
    %v913 = vrot.slane %v869, 2
    %v914 = vsel %vm509, %v912, %v913
    %v915 = vsel %vm509, %v911, %v912
    %v916 = vsel %vm509, %v910, %v911
    %v917 = vsel %vm509, %v913, %v910
    %v918 = vsel %vm526, %v916, 0.0
    %v919 = vsel %vm527, %v915, 0.0
    %v920 = vsel %vm528, %v914, 0.0
    %v921 = vsel %vm529, %v917, 0.0
    %926 = vrot.lane.b32.xlu0 %v890, 32
    %v927 = vpop.permute.xlu0 %926
    %928 = vrot.lane.b32.xlu0 %v891, 32
    %v929 = vpop.permute.xlu0 %928
    %930 = vrot.lane.b32.xlu0 %v892, 32
    %v931 = vpop.permute.xlu0 %930
    %932 = vrot.lane.b32.xlu0 %v893, 32
    %v933 = vpop.permute.xlu0 %932
    %942 = vrot.lane.b32.xlu0 %v894, 64
    %v943 = vpop.permute.xlu0 %942
    %944 = vrot.lane.b32.xlu0 %v895, 64
    %v945 = vpop.permute.xlu0 %944
    %946 = vrot.lane.b32.xlu0 %v896, 64
    %v947 = vpop.permute.xlu0 %946
    %948 = vrot.lane.b32.xlu0 %v897, 64
    %v949 = vpop.permute.xlu0 %948
    %958 = vrot.lane.b32.xlu0 %v906, 96
    %v959 = vpop.permute.xlu0 %958
    %960 = vrot.lane.b32.xlu0 %v907, 96
    %v961 = vpop.permute.xlu0 %960
    %962 = vrot.lane.b32.xlu0 %v908, 96
    %v963 = vpop.permute.xlu0 %962
    %964 = vrot.lane.b32.xlu0 %v909, 96
    %v965 = vpop.permute.xlu0 %964
    %v970 = vsel %vm101, %v878, %v927
    %v971 = vsel %vm101, %v879, %v929
    %v972 = vsel %vm101, %v880, %v931
    %v973 = vsel %vm101, %v881, %v933
    %v974 = vsel %vm586, %v970, %v943
    %v975 = vsel %vm586, %v971, %v945
    %v976 = vsel %vm586, %v972, %v947
    %v977 = vsel %vm586, %v973, %v949
    %v978 = vsel %vm591, %v974, %v959
    %v979 = vsel %vm591, %v975, %v961
    %v980 = vsel %vm591, %v976, %v963
    %v981 = vsel %vm591, %v977, %v965
    %s982 = scalar_lea.vmem %s4, 160
    %v983 = vld [vmem:[%s982] sm:$0xff]
    %v984 = vld [vmem:[%s982 + $0x8] sm:$0xff]
    %v985 = vld [vmem:[%s982 + $0x10] sm:$0xff]
    %v986 = vld [vmem:[%s982 + $0x18] sm:$0xff]
    %v987 = vld [vmem:[%s982 + $0x20] sm:$0xff]
    %v988 = vld [vmem:[%s982 + $0x28] sm:$0xff]
    %v989 = vld [vmem:[%s982 + $0x30] sm:$0xff]
    %v990 = vld [vmem:[%s982 + $0x38] sm:$0xff]
    %v991 = vld [vmem:[%s982 + $0x40] sm:$0xff]
    %v992 = vld [vmem:[%s982 + $0x48] sm:$0xff]
    %v993 = vld [vmem:[%s982 + $0x50] sm:$0xff]
    %v994 = vld [vmem:[%s982 + $0x58] sm:$0xff]
    %v995 = vld [vmem:[%s982 + $0x60] sm:$0xff]
    %v996 = vld [vmem:[%s982 + $0x68] sm:$0xff]
    %v997 = vld [vmem:[%s982 + $0x70] sm:$0xff]
    %v998 = vld [vmem:[%s982 + $0x78] sm:$0xff]
    %v999 = vld [vmem:[%s982 + $0x80] sm:$0xff]
    %v1000 = vld [vmem:[%s982 + $0x88] sm:$0xff]
    %v1001 = vld [vmem:[%s982 + $0x90] sm:$0xff]
    %v1002 = vld [vmem:[%s982 + $0x98] sm:$0xff]
    %s1003 = scalar_lea.vmem %s5, 1
    %v1004 = vld [vmem:[%s1003] sm:$0x1]
    %v1006 = vperm.slane %v1004, 0
    %v1009 = vsel %vm101, %v918, 0
    %v1012 = vsel %vm101, %v919, 0
    %v1015 = vsel %vm101, %v920, 0
    %v1018 = vsel %vm101, %v921, 0
    %1020 = vmatpush.msra.mxu0 %v998
    %1021 = vmatpush.msra.mxu0 %v997
    %1022 = vmatpush.msra.mxu0 %v996
    %1023 = vmatpush.msra.mxu0 %v995
    %1024 = vmatpush.msra.mxu0 %v994
    %1025 = vmatpush.msra.mxu0 %v993
    %1026 = vmatpush.msra.mxu0 %v992
    %1027 = vmatpush.msra.mxu0 %v991
    %1028 = vmatpush.msra.mxu0 %v990
    %1029 = vmatpush.msra.mxu0 %v989
    %1030 = vmatpush.msra.mxu0 %v988
    %1031 = vmatpush.msra.mxu0 %v987
    %1032 = vmatpush.msra.mxu0 %v986
    %1033 = vmatpush.msra.mxu0 %v985
    %1034 = vmatpush.msra.mxu0 %v984
    %1035 = vmatpush.msra.mxu0 %v983
    %1036 = vmatmul.f32.gmra.mxu0 %v978
    %v1037 = vpop.f32.mrf.mxu0
    %v1038 = vadd.f32 %v1006, %v1037
    %1039 = vmatmul.f32.gmra.mxu0 %v979
    %v1040 = vpop.f32.mrf.mxu0
    %v1041 = vadd.f32 %v1006, %v1040
    %1042 = vmatmul.f32.gmra.mxu0 %v980
    %v1043 = vpop.f32.mrf.mxu0
    %v1044 = vadd.f32 %v1006, %v1043
    %1045 = vmatmul.f32.gmra.mxu0 %v981
    %v1046 = vpop.f32.mrf.mxu0
    %v1047 = vadd.f32 %v1006, %v1046
    %1048 = vdwg.mxu0
    %1049 = vmatpush.msra.mxu0 0.0
    %1050 = vmatpush.msra.mxu0 0.0
    %1051 = vmatpush.msra.mxu0 0.0
    %1052 = vmatpush.msra.mxu0 0.0
    %1053 = vmatpush.msra.mxu0 0.0
    %1054 = vmatpush.msra.mxu0 0.0
    %1055 = vmatpush.msra.mxu0 0.0
    %1056 = vmatpush.msra.mxu0 0.0
    %1057 = vmatpush.msra.mxu0 0.0
    %1058 = vmatpush.msra.mxu0 0.0
    %1059 = vmatpush.msra.mxu0 0.0
    %1060 = vmatpush.msra.mxu0 0.0
    %1061 = vmatpush.msra.mxu0 %v1002
    %1062 = vmatpush.msra.mxu0 %v1001
    %1063 = vmatpush.msra.mxu0 %v1000
    %1064 = vmatpush.msra.mxu0 %v999
    %1065 = vmatmul.f32.gmra.mxu0 %v1009
    %v1066 = vpop.f32.mrf.mxu0
    %v1067 = vadd.f32 %v1038, %v1066
    %1068 = vmatmul.f32.gmra.mxu0 %v1012
    %v1069 = vpop.f32.mrf.mxu0
    %v1070 = vadd.f32 %v1041, %v1069
    %1071 = vmatmul.f32.gmra.mxu0 %v1015
    %v1072 = vpop.f32.mrf.mxu0
    %v1073 = vadd.f32 %v1044, %v1072
    %1074 = vmatmul.f32.gmra.mxu0 %v1018
    %v1075 = vpop.f32.mrf.mxu0
    %v1076 = vadd.f32 %v1047, %v1075
    %1077 = vdwg.mxu0
    %v1078 = vmax.f32 %v1067, 0.0
    %v1079 = vmax.f32 %v1070, 0.0
    %v1080 = vmax.f32 %v1073, 0.0
    %v1081 = vmax.f32 %v1076, 0.0
    %vm1082 = vcmp.ne.f32.partialorder %v1067, %v1067
    %vm1083 = vcmp.ne.f32.partialorder %v1070, %v1070
    %vm1084 = vcmp.ne.f32.partialorder %v1073, %v1073
    %vm1085 = vcmp.ne.f32.partialorder %v1076, %v1076
    %v1086 = vadd.f32 %v1067, 0.0
    %v1087 = vadd.f32 %v1070, 0.0
    %v1088 = vadd.f32 %v1073, 0.0
    %v1089 = vadd.f32 %v1076, 0.0
    %v1090 = vand.u32 2147483647, %v1067
    %v1091 = vand.u32 2147483647, %v1070
    %v1092 = vand.u32 2147483647, %v1073
    %v1093 = vand.u32 2147483647, %v1076
    %v1094 = vsub.f32 0.0, %v1090
    %v1095 = vsub.f32 0.0, %v1091
    %v1096 = vsub.f32 0.0, %v1092
    %v1097 = vsub.f32 0.0, %v1093
    %v1098 = vmul.f32 %v1094, 1.442695
    %v1099 = vpow.pop %v1098
    %v1100 = vmul.f32 %v1095, 1.442695
    %v1101 = vpow.pop %v1100
    %v1102 = vmul.f32 %v1096, 1.442695
    %v1103 = vpow.pop %v1102
    %v1104 = vmul.f32 %v1097, 1.442695
    %v1105 = vpow.pop %v1104
    %v1106 = vadd.f32 %v1099, 1.0
    %v1107 = vlog2.pop %v1106
    %v1108 = vmul.f32 %v1107, 0.6931472
    %v1109 = vmul.f32 -0.5, %v1099
    %v1110 = vadd.f32 %v1109, 1.0
    %v1111 = vmul.f32 %v1110, %v1099
    %v1112 = vand.u32 2147483647, %v1099
    %vm1113 = vcmp.lt.f32.partialorder %v1112, 0.0004427343
    %v1114 = vsel %vm1113, %v1111, %v1108
    %v1115 = vadd.f32 %v1101, 1.0
    %v1116 = vlog2.pop %v1115
    %v1117 = vmul.f32 %v1116, 0.6931472
    %v1118 = vmul.f32 -0.5, %v1101
    %v1119 = vadd.f32 %v1118, 1.0
    %v1120 = vmul.f32 %v1119, %v1101
    %v1121 = vand.u32 2147483647, %v1101
    %vm1122 = vcmp.lt.f32.partialorder %v1121, 0.0004427343
    %v1123 = vsel %vm1122, %v1120, %v1117
    %v1124 = vadd.f32 %v1103, 1.0
    %v1125 = vlog2.pop %v1124
    %v1126 = vmul.f32 %v1125, 0.6931472
    %v1127 = vmul.f32 -0.5, %v1103
    %v1128 = vadd.f32 %v1127, 1.0
    %v1129 = vmul.f32 %v1128, %v1103
    %v1130 = vand.u32 2147483647, %v1103
    %vm1131 = vcmp.lt.f32.partialorder %v1130, 0.0004427343
    %v1132 = vsel %vm1131, %v1129, %v1126
    %v1133 = vadd.f32 %v1105, 1.0
    %v1134 = vlog2.pop %v1133
    %v1135 = vmul.f32 %v1134, 0.6931472
    %v1136 = vmul.f32 -0.5, %v1105
    %v1137 = vadd.f32 %v1136, 1.0
    %v1138 = vmul.f32 %v1137, %v1105
    %v1139 = vand.u32 2147483647, %v1105
    %vm1140 = vcmp.lt.f32.partialorder %v1139, 0.0004427343
    %v1141 = vsel %vm1140, %v1138, %v1135
    %v1142 = vadd.f32 %v1078, %v1114
    %v1143 = vadd.f32 %v1079, %v1123
    %v1144 = vadd.f32 %v1080, %v1132
    %v1145 = vadd.f32 %v1081, %v1141
    %v1146 = vsel %vm1082, %v1086, %v1142
    %v1147 = vsel %vm1083, %v1087, %v1143
    %v1148 = vsel %vm1084, %v1088, %v1144
    %v1149 = vsel %vm1085, %v1089, %v1145
    %v1150 = vtanh.pop %v1146
    %v1151 = vtanh.pop %v1147
    %v1152 = vtanh.pop %v1148
    %v1153 = vtanh.pop %v1149
    %v1154 = vmul.f32 %v1067, %v1150
    %v1155 = vmul.f32 %v1070, %v1151
    %v1156 = vmul.f32 %v1073, %v1152
    %v1157 = vmul.f32 %v1076, %v1153
    %v1158 = vxor.u32 %v1154, 2147483648
    %v1159 = vxor.u32 %v1155, 2147483648
    %v1160 = vxor.u32 %v1156, 2147483648
    %v1161 = vxor.u32 %v1157, 2147483648
    %v1162 = vmul.f32 %v1158, 1.442695
    %v1163 = vpow.pop %v1162
    %v1164 = vmul.f32 %v1159, 1.442695
    %v1165 = vpow.pop %v1164
    %v1166 = vmul.f32 %v1160, 1.442695
    %v1167 = vpow.pop %v1166
    %v1168 = vmul.f32 %v1161, 1.442695
    %v1169 = vpow.pop %v1168
    %v1170 = vadd.f32 %v1163, 1.0
    %v1171 = vadd.f32 %v1165, 1.0
    %v1172 = vadd.f32 %v1167, 1.0
    %v1173 = vadd.f32 %v1169, 1.0
    %v1174 = vrcp.pop %v1170
    %v1175 = vmul.f32 %v1170, %v1174
    %v1176 = vsub.f32 1.0, %v1175
    %v1177 = vmul.f32 %v1174, %v1176
    %v1178 = vadd.f32 %v1174, %v1177
    %vm1179 = vweird.f32 %v1170
    %vm1180 = vweird.f32 %v1174
    %vm1181 = vmor %vm1179, %vm1180
    %v1182 = vsel %vm1181, %v1174, %v1178
    %v1183 = vand.u32 2147483647, %v1170
    %vm1184 = vcmp.eq.f32.partialorder %v1183, 8.507059e+37
    %v1185 = vand.u32 %v1170, 2147483648
    %v1186 = vor.u32 1.1754944e-38, %v1185
    %v1187 = vsel %vm1184, %v1186, %v1182
    %v1188 = vmul.f32 1.0, %v1187
    %v1189 = vrcp.pop %v1171
    %v1190 = vmul.f32 %v1171, %v1189
    %v1191 = vsub.f32 1.0, %v1190
    %v1192 = vmul.f32 %v1189, %v1191
    %v1193 = vadd.f32 %v1189, %v1192
    %vm1194 = vweird.f32 %v1171
    %vm1195 = vweird.f32 %v1189
    %vm1196 = vmor %vm1194, %vm1195
    %v1197 = vsel %vm1196, %v1189, %v1193
    %v1198 = vand.u32 2147483647, %v1171
    %vm1199 = vcmp.eq.f32.partialorder %v1198, 8.507059e+37
    %v1200 = vand.u32 %v1171, 2147483648
    %v1201 = vor.u32 1.1754944e-38, %v1200
    %v1202 = vsel %vm1199, %v1201, %v1197
    %v1203 = vmul.f32 1.0, %v1202
    %v1204 = vrcp.pop %v1172
    %v1205 = vmul.f32 %v1172, %v1204
    %v1206 = vsub.f32 1.0, %v1205
    %v1207 = vmul.f32 %v1204, %v1206
    %v1208 = vadd.f32 %v1204, %v1207
    %vm1209 = vweird.f32 %v1172
    %vm1210 = vweird.f32 %v1204
    %vm1211 = vmor %vm1209, %vm1210
    %v1212 = vsel %vm1211, %v1204, %v1208
    %v1213 = vand.u32 2147483647, %v1172
    %vm1214 = vcmp.eq.f32.partialorder %v1213, 8.507059e+37
    %v1215 = vand.u32 %v1172, 2147483648
    %v1216 = vor.u32 1.1754944e-38, %v1215
    %v1217 = vsel %vm1214, %v1216, %v1212
    %v1218 = vmul.f32 1.0, %v1217
    %v1219 = vrcp.pop %v1173
    %v1220 = vmul.f32 %v1173, %v1219
    %v1221 = vsub.f32 1.0, %v1220
    %v1222 = vmul.f32 %v1219, %v1221
    %v1223 = vadd.f32 %v1219, %v1222
    %vm1224 = vweird.f32 %v1173
    %vm1225 = vweird.f32 %v1219
    %vm1226 = vmor %vm1224, %vm1225
    %v1227 = vsel %vm1226, %v1219, %v1223
    %v1228 = vand.u32 2147483647, %v1173
    %vm1229 = vcmp.eq.f32.partialorder %v1228, 8.507059e+37
    %v1230 = vand.u32 %v1173, 2147483648
    %v1231 = vor.u32 1.1754944e-38, %v1230
    %v1232 = vsel %vm1229, %v1231, %v1227
    %v1233 = vmul.f32 1.0, %v1232
    %1238 = vrot.lane.b32.xlu0 %v1188, 96
    %v1239 = vpop.permute.xlu0 %1238
    %1240 = vrot.lane.b32.xlu0 %v1203, 96
    %v1241 = vpop.permute.xlu0 %1240
    %1242 = vrot.lane.b32.xlu0 %v1218, 96
    %v1243 = vpop.permute.xlu0 %1242
    %1244 = vrot.lane.b32.xlu0 %v1233, 96
    %v1245 = vpop.permute.xlu0 %1244
    %v1250 = vmul.f32 %v1154, %v1239
    %v1251 = vmul.f32 %v1155, %v1241
    %v1252 = vmul.f32 %v1156, %v1243
    %v1253 = vmul.f32 %v1157, %v1245
    %v1254 = vadd.f32 %v866, %v1250
    %v1255 = vadd.f32 %v867, %v1251
    %v1256 = vadd.f32 %v868, %v1252
    %v1257 = vadd.f32 %v869, %v1253
    %v1258 = vld [vmem:[%s6] sm:$0xff]
    %v1259 = vld [vmem:[%s6 + $0x8] sm:$0xff]
    %v1260 = vld [vmem:[%s6 + $0x10] sm:$0xff]
    %v1261 = vld [vmem:[%s6 + $0x18] sm:$0xff]
    %v1263 = vsel %vm101, %v1254, 0
    %v1266 = vsel %vm101, %v1255, 0
    %v1269 = vsel %vm101, %v1256, 0
    %v1272 = vsel %vm101, %v1257, 0
    %1274 = vmatpush.msra.mxu0 0.0
    %1275 = vmatpush.msra.mxu0 0.0
    %1276 = vmatpush.msra.mxu0 0.0
    %1277 = vmatpush.msra.mxu0 0.0
    %1278 = vmatpush.msra.mxu0 0.0
    %1279 = vmatpush.msra.mxu0 0.0
    %1280 = vmatpush.msra.mxu0 0.0
    %1281 = vmatpush.msra.mxu0 0.0
    %1282 = vmatpush.msra.mxu0 0.0
    %1283 = vmatpush.msra.mxu0 0.0
    %1284 = vmatpush.msra.mxu0 0.0
    %1285 = vmatpush.msra.mxu0 0.0
    %1286 = vmatpush.msra.mxu0 %v1261
    %1287 = vmatpush.msra.mxu0 %v1260
    %1288 = vmatpush.msra.mxu0 %v1259
    %1289 = vmatpush.msra.mxu0 %v1258
    %1290 = vmatmul.f32.gmra.mxu0 %v1263
    %v1291 = vpop.f32.mrf.mxu0
    %v1292 = vadd.f32 0.0, %v1291
    %1293 = vmatmul.f32.gmra.mxu0 %v1266
    %v1294 = vpop.f32.mrf.mxu0
    %v1295 = vadd.f32 0.0, %v1294
    %1296 = vmatmul.f32.gmra.mxu0 %v1269
    %v1297 = vpop.f32.mrf.mxu0
    %v1298 = vadd.f32 0.0, %v1297
    %1299 = vmatmul.f32.gmra.mxu0 %v1272
    %v1300 = vpop.f32.mrf.mxu0
    %v1301 = vadd.f32 0.0, %v1300
    %1302 = vdwg.mxu0
    %v1303 = vld [vmem:[%s7] sm:$0xff]
    %v1304 = vld [vmem:[%s7 + $0x8] sm:$0xff]
    %v1305 = vld [vmem:[%s7 + $0x10] sm:$0xff]
    %v1306 = vld [vmem:[%s7 + $0x18] sm:$0xff]
    %1307 = vmatpush.msra.mxu0 0.0
    %1308 = vmatpush.msra.mxu0 0.0
    %1309 = vmatpush.msra.mxu0 0.0
    %1310 = vmatpush.msra.mxu0 0.0
    %1311 = vmatpush.msra.mxu0 0.0
    %1312 = vmatpush.msra.mxu0 0.0
    %1313 = vmatpush.msra.mxu0 0.0
    %1314 = vmatpush.msra.mxu0 0.0
    %1315 = vmatpush.msra.mxu0 0.0
    %1316 = vmatpush.msra.mxu0 0.0
    %1317 = vmatpush.msra.mxu0 0.0
    %1318 = vmatpush.msra.mxu0 0.0
    %1319 = vmatpush.msra.mxu0 %v1306
    %1320 = vmatpush.msra.mxu0 %v1305
    %1321 = vmatpush.msra.mxu0 %v1304
    %1322 = vmatpush.msra.mxu0 %v1303
    %1323 = vmatmul.f32.gmra.mxu0 %v1263
    %v1324 = vpop.f32.mrf.mxu0
    %v1325 = vadd.f32 0.0, %v1324
    %1326 = vmatmul.f32.gmra.mxu0 %v1266
    %v1327 = vpop.f32.mrf.mxu0
    %v1328 = vadd.f32 0.0, %v1327
    %1329 = vmatmul.f32.gmra.mxu0 %v1269
    %v1330 = vpop.f32.mrf.mxu0
    %v1331 = vadd.f32 0.0, %v1330
    %1332 = vmatmul.f32.gmra.mxu0 %v1272
    %v1333 = vpop.f32.mrf.mxu0
    %v1334 = vadd.f32 0.0, %v1333
    %1335 = vdwg.mxu0
    %v1336 = vld [vmem:[%s8] sm:$0xff]
    %v1337 = vld [vmem:[%s8 + $0x8] sm:$0xff]
    %v1338 = vld [vmem:[%s8 + $0x10] sm:$0xff]
    %v1339 = vld [vmem:[%s8 + $0x18] sm:$0xff]
    %1340 = vmatpush.msra.mxu0 0.0
    %1341 = vmatpush.msra.mxu0 0.0
    %1342 = vmatpush.msra.mxu0 0.0
    %1343 = vmatpush.msra.mxu0 0.0
    %1344 = vmatpush.msra.mxu0 0.0
    %1345 = vmatpush.msra.mxu0 0.0
    %1346 = vmatpush.msra.mxu0 0.0
    %1347 = vmatpush.msra.mxu0 0.0
    %1348 = vmatpush.msra.mxu0 0.0
    %1349 = vmatpush.msra.mxu0 0.0
    %1350 = vmatpush.msra.mxu0 0.0
    %1351 = vmatpush.msra.mxu0 0.0
    %1352 = vmatpush.msra.mxu0 %v1339
    %1353 = vmatpush.msra.mxu0 %v1338
    %1354 = vmatpush.msra.mxu0 %v1337
    %1355 = vmatpush.msra.mxu0 %v1336
    %1356 = vmatmul.f32.gmra.mxu0 %v1263
    %v1357 = vpop.f32.mrf.mxu0
    %v1358 = vadd.f32 0.0, %v1357
    %1359 = vmatmul.f32.gmra.mxu0 %v1266
    %v1360 = vpop.f32.mrf.mxu0
    %v1361 = vadd.f32 0.0, %v1360
    %1362 = vmatmul.f32.gmra.mxu0 %v1269
    %v1363 = vpop.f32.mrf.mxu0
    %v1364 = vadd.f32 0.0, %v1363
    %1365 = vmatmul.f32.gmra.mxu0 %v1272
    %v1366 = vpop.f32.mrf.mxu0
    %v1367 = vadd.f32 0.0, %v1366
    %1368 = vdwg.mxu0
    %v1370 = vsel %vm55, %v1292, 0
    %v1373 = vsel %vm55, %v1295, 0
    %v1376 = vsel %vm55, %v1325, 0
    %v1379 = vsel %vm55, %v1328, 0
    %1381 = vmatpush.xpose.msra.mxu0 0.0
    %1382 = vmatpush.xpose.msra.mxu0 0.0
    %1383 = vmatpush.xpose.msra.mxu0 0.0
    %1384 = vmatpush.xpose.msra.mxu0 0.0
    %1385 = vmatpush.xpose.msra.mxu0 0.0
    %1386 = vmatpush.xpose.msra.mxu0 0.0
    %1387 = vmatpush.xpose.msra.mxu0 0.0
    %1388 = vmatpush.xpose.msra.mxu0 0.0
    %1389 = vmatpush.xpose.msra.mxu0 0.0
    %1390 = vmatpush.xpose.msra.mxu0 0.0
    %1391 = vmatpush.xpose.msra.mxu0 0.0
    %1392 = vmatpush.xpose.msra.mxu0 0.0
    %1393 = vmatpush.xpose.msra.mxu0 0.0
    %1394 = vmatpush.xpose.msra.mxu0 0.0
    %1395 = vmatpush.xpose.msra.mxu0 %v1379
    %1396 = vmatpush.xpose.msra.mxu0 %v1376
    %1397 = vmatmul.f32.gmra.mxu0 %v1370
    %v1398 = vpop.f32.mrf.mxu0
    %v1399 = vadd.f32 0.0, %v1398
    %1400 = vmatmul.f32.gmra.mxu0 %v1373
    %v1401 = vpop.f32.mrf.mxu0
    %v1402 = vadd.f32 0.0, %v1401
    %1403 = vdwg.mxu0
    %v1405 = vsel %vm55, %v1298, 0
    %v1408 = vsel %vm55, %v1301, 0
    %v1411 = vsel %vm55, %v1331, 0
    %v1414 = vsel %vm55, %v1334, 0
    %1416 = vmatpush.xpose.msra.mxu0 0.0
    %1417 = vmatpush.xpose.msra.mxu0 0.0
    %1418 = vmatpush.xpose.msra.mxu0 0.0
    %1419 = vmatpush.xpose.msra.mxu0 0.0
    %1420 = vmatpush.xpose.msra.mxu0 0.0
    %1421 = vmatpush.xpose.msra.mxu0 0.0
    %1422 = vmatpush.xpose.msra.mxu0 0.0
    %1423 = vmatpush.xpose.msra.mxu0 0.0
    %1424 = vmatpush.xpose.msra.mxu0 0.0
    %1425 = vmatpush.xpose.msra.mxu0 0.0
    %1426 = vmatpush.xpose.msra.mxu0 0.0
    %1427 = vmatpush.xpose.msra.mxu0 0.0
    %1428 = vmatpush.xpose.msra.mxu0 0.0
    %1429 = vmatpush.xpose.msra.mxu0 0.0
    %1430 = vmatpush.xpose.msra.mxu0 %v1414
    %1431 = vmatpush.xpose.msra.mxu0 %v1411
    %1432 = vmatmul.f32.gmra.mxu0 %v1405
    %v1433 = vpop.f32.mrf.mxu0
    %v1434 = vadd.f32 0.0, %v1433
    %1435 = vmatmul.f32.gmra.mxu0 %v1408
    %v1436 = vpop.f32.mrf.mxu0
    %v1437 = vadd.f32 0.0, %v1436
    %1438 = vdwg.mxu0
    %v1439 = vmul.f32 %v1399, 0.25
    %v1440 = vmul.f32 %v1402, 0.25
    %v1441 = vmul.f32 %v1434, 0.25
    %v1442 = vmul.f32 %v1437, 0.25
    %v1443 = vsel %vm51, 1, 0
    %v1444 = vsel %vm52, 1, 0
    %v1445 = vperm.slane %v1443, 0
    %v1446 = vperm.slane %v1444, 0
    %vm1447 = vcmp.eq.s32.totalorder %v1445, 1
    %vm1448 = vcmp.eq.s32.totalorder %v1446, 1
    %v1449 = vsel %vm1447, -1e+09, %v1439
    %v1450 = vsel %vm1447, -1e+09, %v1440
    %v1451 = vsel %vm1448, -1e+09, %v1441
    %v1452 = vsel %vm1448, -1e+09, %v1442
    %v1453 = vsel %vm55, %v1449, -inf
    %1454 = vmax.xlane.f32.xlu0 %v1453
    %v1455 = vpop.xlane.xlu0 %1454
    %v1456 = vsel %vm55, %v1450, -inf
    %1457 = vmax.xlane.f32.xlu0 %v1456
    %v1458 = vpop.xlane.xlu0 %1457
    %v1459 = vsel %vm55, %v1451, -inf
    %1460 = vmax.xlane.f32.xlu0 %v1459
    %v1461 = vpop.xlane.xlu0 %1460
    %v1462 = vsel %vm55, %v1452, -inf
    %1463 = vmax.xlane.f32.xlu0 %v1462
    %v1464 = vpop.xlane.xlu0 %1463
    %v1465 = vsub.f32 %v1449, %v1455
    %v1466 = vsub.f32 %v1450, %v1458
    %v1467 = vsub.f32 %v1451, %v1461
    %v1468 = vsub.f32 %v1452, %v1464
    %v1469 = vmul.f32 %v1465, 1.442695
    %v1470 = vpow.pop %v1469
    %v1471 = vmul.f32 %v1466, 1.442695
    %v1472 = vpow.pop %v1471
    %v1473 = vmul.f32 %v1467, 1.442695
    %v1474 = vpow.pop %v1473
    %v1475 = vmul.f32 %v1468, 1.442695
    %v1476 = vpow.pop %v1475
    %v1477 = vsel %vm55, %v1470, 0.0
    %1478 = vadd.xlane.f32.xlu0 %v1477
    %v1479 = vpop.xlane.xlu0 %1478
    %v1480 = vsel %vm55, %v1472, 0.0
    %1481 = vadd.xlane.f32.xlu0 %v1480
    %v1482 = vpop.xlane.xlu0 %1481
    %v1483 = vsel %vm55, %v1474, 0.0
    %1484 = vadd.xlane.f32.xlu0 %v1483
    %v1485 = vpop.xlane.xlu0 %1484
    %v1486 = vsel %vm55, %v1476, 0.0
    %1487 = vadd.xlane.f32.xlu0 %v1486
    %v1488 = vpop.xlane.xlu0 %1487
    %v1489 = vrcp.pop %v1479
    %v1490 = vrcp.pop %v1482
    %v1491 = vrcp.pop %v1485
    %v1492 = vrcp.pop %v1488
    %v1493 = vmul.f32 %v1470, %v1489
    %v1494 = vmul.f32 %v1472, %v1490
    %v1495 = vmul.f32 %v1474, %v1491
    %v1496 = vmul.f32 %v1476, %v1492
    %v1498 = vsel %vm55, %v1493, 0
    %v1501 = vsel %vm55, %v1494, 0
    %1503 = vmatpush.msra.mxu0 0.0
    %1504 = vmatpush.msra.mxu0 0.0
    %1505 = vmatpush.msra.mxu0 0.0
    %1506 = vmatpush.msra.mxu0 0.0
    %1507 = vmatpush.msra.mxu0 0.0
    %1508 = vmatpush.msra.mxu0 0.0
    %1509 = vmatpush.msra.mxu0 0.0
    %1510 = vmatpush.msra.mxu0 0.0
    %1511 = vmatpush.msra.mxu0 0.0
    %1512 = vmatpush.msra.mxu0 0.0
    %1513 = vmatpush.msra.mxu0 0.0
    %1514 = vmatpush.msra.mxu0 0.0
    %1515 = vmatpush.msra.mxu0 0.0
    %1516 = vmatpush.msra.mxu0 0.0
    %1517 = vmatpush.msra.mxu0 %v1361
    %1518 = vmatpush.msra.mxu0 %v1358
    %1519 = vmatmul.f32.gmra.mxu0 %v1498
    %v1520 = vpop.f32.mrf.mxu0
    %v1521 = vadd.f32 0.0, %v1520
    %1522 = vmatmul.f32.gmra.mxu0 %v1501
    %v1523 = vpop.f32.mrf.mxu0
    %v1524 = vadd.f32 0.0, %v1523
    %1525 = vdwg.mxu0
    %v1527 = vsel %vm55, %v1495, 0
    %v1530 = vsel %vm55, %v1496, 0
    %1532 = vmatpush.msra.mxu0 0.0
    %1533 = vmatpush.msra.mxu0 0.0
    %1534 = vmatpush.msra.mxu0 0.0
    %1535 = vmatpush.msra.mxu0 0.0
    %1536 = vmatpush.msra.mxu0 0.0
    %1537 = vmatpush.msra.mxu0 0.0
    %1538 = vmatpush.msra.mxu0 0.0
    %1539 = vmatpush.msra.mxu0 0.0
    %1540 = vmatpush.msra.mxu0 0.0
    %1541 = vmatpush.msra.mxu0 0.0
    %1542 = vmatpush.msra.mxu0 0.0
    %1543 = vmatpush.msra.mxu0 0.0
    %1544 = vmatpush.msra.mxu0 0.0
    %1545 = vmatpush.msra.mxu0 0.0
    %1546 = vmatpush.msra.mxu0 %v1367
    %1547 = vmatpush.msra.mxu0 %v1364
    %1548 = vmatmul.f32.gmra.mxu0 %v1527
    %v1549 = vpop.f32.mrf.mxu0
    %v1550 = vadd.f32 0.0, %v1549
    %1551 = vmatmul.f32.gmra.mxu0 %v1530
    %v1552 = vpop.f32.mrf.mxu0
    %v1553 = vadd.f32 0.0, %v1552
    %1554 = vdwg.mxu0
    %1555 = vrot.lane.b32.xlu0 %v1292, 112
    %v1556 = vpop.permute.xlu0 %1555
    %1557 = vrot.lane.b32.xlu0 %v1295, 112
    %v1558 = vpop.permute.xlu0 %1557
    %1559 = vrot.lane.b32.xlu0 %v1325, 112
    %v1560 = vpop.permute.xlu0 %1559
    %1561 = vrot.lane.b32.xlu0 %v1328, 112
    %v1562 = vpop.permute.xlu0 %1561
    %v1563 = vsel %vm55, %v1556, 0
    %v1565 = vsel %vm55, %v1558, 0
    %v1567 = vsel %vm55, %v1560, 0
    %v1569 = vsel %vm55, %v1562, 0
    %1571 = vmatpush.xpose.msra.mxu0 0.0
    %1572 = vmatpush.xpose.msra.mxu0 0.0
    %1573 = vmatpush.xpose.msra.mxu0 0.0
    %1574 = vmatpush.xpose.msra.mxu0 0.0
    %1575 = vmatpush.xpose.msra.mxu0 0.0
    %1576 = vmatpush.xpose.msra.mxu0 0.0
    %1577 = vmatpush.xpose.msra.mxu0 0.0
    %1578 = vmatpush.xpose.msra.mxu0 0.0
    %1579 = vmatpush.xpose.msra.mxu0 0.0
    %1580 = vmatpush.xpose.msra.mxu0 0.0
    %1581 = vmatpush.xpose.msra.mxu0 0.0
    %1582 = vmatpush.xpose.msra.mxu0 0.0
    %1583 = vmatpush.xpose.msra.mxu0 0.0
    %1584 = vmatpush.xpose.msra.mxu0 0.0
    %1585 = vmatpush.xpose.msra.mxu0 %v1569
    %1586 = vmatpush.xpose.msra.mxu0 %v1567
    %1587 = vmatmul.f32.gmra.mxu0 %v1563
    %v1588 = vpop.f32.mrf.mxu0
    %v1589 = vadd.f32 0.0, %v1588
    %1590 = vmatmul.f32.gmra.mxu0 %v1565
    %v1591 = vpop.f32.mrf.mxu0
    %v1592 = vadd.f32 0.0, %v1591
    %1593 = vdwg.mxu0
    %1594 = vrot.lane.b32.xlu0 %v1298, 112
    %v1595 = vpop.permute.xlu0 %1594
    %1596 = vrot.lane.b32.xlu0 %v1301, 112
    %v1597 = vpop.permute.xlu0 %1596
    %1598 = vrot.lane.b32.xlu0 %v1331, 112
    %v1599 = vpop.permute.xlu0 %1598
    %1600 = vrot.lane.b32.xlu0 %v1334, 112
    %v1601 = vpop.permute.xlu0 %1600
    %v1602 = vsel %vm55, %v1595, 0
    %v1604 = vsel %vm55, %v1597, 0
    %v1606 = vsel %vm55, %v1599, 0
    %v1608 = vsel %vm55, %v1601, 0
    %1610 = vmatpush.xpose.msra.mxu0 0.0
    %1611 = vmatpush.xpose.msra.mxu0 0.0
    %1612 = vmatpush.xpose.msra.mxu0 0.0
    %1613 = vmatpush.xpose.msra.mxu0 0.0
    %1614 = vmatpush.xpose.msra.mxu0 0.0
    %1615 = vmatpush.xpose.msra.mxu0 0.0
    %1616 = vmatpush.xpose.msra.mxu0 0.0
    %1617 = vmatpush.xpose.msra.mxu0 0.0
    %1618 = vmatpush.xpose.msra.mxu0 0.0
    %1619 = vmatpush.xpose.msra.mxu0 0.0
    %1620 = vmatpush.xpose.msra.mxu0 0.0
    %1621 = vmatpush.xpose.msra.mxu0 0.0
    %1622 = vmatpush.xpose.msra.mxu0 0.0
    %1623 = vmatpush.xpose.msra.mxu0 0.0
    %1624 = vmatpush.xpose.msra.mxu0 %v1608
    %1625 = vmatpush.xpose.msra.mxu0 %v1606
    %1626 = vmatmul.f32.gmra.mxu0 %v1602
    %v1627 = vpop.f32.mrf.mxu0
    %v1628 = vadd.f32 0.0, %v1627
    %1629 = vmatmul.f32.gmra.mxu0 %v1604
    %v1630 = vpop.f32.mrf.mxu0
    %v1631 = vadd.f32 0.0, %v1630
    %1632 = vdwg.mxu0
    %v1633 = vmul.f32 %v1589, 0.25
    %v1634 = vmul.f32 %v1592, 0.25
    %v1635 = vmul.f32 %v1628, 0.25
    %v1636 = vmul.f32 %v1631, 0.25
    %v1637 = vsel %vm1447, -1e+09, %v1633
    %v1638 = vsel %vm1447, -1e+09, %v1634
    %v1639 = vsel %vm1448, -1e+09, %v1635
    %v1640 = vsel %vm1448, -1e+09, %v1636
    %v1641 = vsel %vm55, %v1637, -inf
    %1642 = vmax.xlane.f32.xlu0 %v1641
    %v1643 = vpop.xlane.xlu0 %1642
    %v1644 = vsel %vm55, %v1638, -inf
    %1645 = vmax.xlane.f32.xlu0 %v1644
    %v1646 = vpop.xlane.xlu0 %1645
    %v1647 = vsel %vm55, %v1639, -inf
    %1648 = vmax.xlane.f32.xlu0 %v1647
    %v1649 = vpop.xlane.xlu0 %1648
    %v1650 = vsel %vm55, %v1640, -inf
    %1651 = vmax.xlane.f32.xlu0 %v1650
    %v1652 = vpop.xlane.xlu0 %1651
    %v1653 = vsub.f32 %v1637, %v1643
    %v1654 = vsub.f32 %v1638, %v1646
    %v1655 = vsub.f32 %v1639, %v1649
    %v1656 = vsub.f32 %v1640, %v1652
    %v1657 = vmul.f32 %v1653, 1.442695
    %v1658 = vpow.pop %v1657
    %v1659 = vmul.f32 %v1654, 1.442695
    %v1660 = vpow.pop %v1659
    %v1661 = vmul.f32 %v1655, 1.442695
    %v1662 = vpow.pop %v1661
    %v1663 = vmul.f32 %v1656, 1.442695
    %v1664 = vpow.pop %v1663
    %v1665 = vsel %vm55, %v1658, 0.0
    %1666 = vadd.xlane.f32.xlu0 %v1665
    %v1667 = vpop.xlane.xlu0 %1666
    %v1668 = vsel %vm55, %v1660, 0.0
    %1669 = vadd.xlane.f32.xlu0 %v1668
    %v1670 = vpop.xlane.xlu0 %1669
    %v1671 = vsel %vm55, %v1662, 0.0
    %1672 = vadd.xlane.f32.xlu0 %v1671
    %v1673 = vpop.xlane.xlu0 %1672
    %v1674 = vsel %vm55, %v1664, 0.0
    %1675 = vadd.xlane.f32.xlu0 %v1674
    %v1676 = vpop.xlane.xlu0 %1675
    %v1677 = vrcp.pop %v1667
    %v1678 = vrcp.pop %v1670
    %v1679 = vrcp.pop %v1673
    %v1680 = vrcp.pop %v1676
    %v1681 = vmul.f32 %v1658, %v1677
    %v1682 = vmul.f32 %v1660, %v1678
    %v1683 = vmul.f32 %v1662, %v1679
    %v1684 = vmul.f32 %v1664, %v1680
    %1687 = vrot.lane.b32.xlu0 %v1358, 112
    %v1688 = vpop.permute.xlu0 %1687
    %1689 = vrot.lane.b32.xlu0 %v1361, 112
    %v1690 = vpop.permute.xlu0 %1689
    %v1694 = vsel %vm55, %v1681, 0
    %v1697 = vsel %vm55, %v1682, 0
    %1699 = vmatpush.msra.mxu0 0.0
    %1700 = vmatpush.msra.mxu0 0.0
    %1701 = vmatpush.msra.mxu0 0.0
    %1702 = vmatpush.msra.mxu0 0.0
    %1703 = vmatpush.msra.mxu0 0.0
    %1704 = vmatpush.msra.mxu0 0.0
    %1705 = vmatpush.msra.mxu0 0.0
    %1706 = vmatpush.msra.mxu0 0.0
    %1707 = vmatpush.msra.mxu0 0.0
    %1708 = vmatpush.msra.mxu0 0.0
    %1709 = vmatpush.msra.mxu0 0.0
    %1710 = vmatpush.msra.mxu0 0.0
    %1711 = vmatpush.msra.mxu0 0.0
    %1712 = vmatpush.msra.mxu0 0.0
    %1713 = vmatpush.msra.mxu0 %v1690
    %1714 = vmatpush.msra.mxu0 %v1688
    %1715 = vmatmul.f32.gmra.mxu0 %v1694
    %v1716 = vpop.f32.mrf.mxu0
    %v1717 = vadd.f32 0.0, %v1716
    %1718 = vmatmul.f32.gmra.mxu0 %v1697
    %v1719 = vpop.f32.mrf.mxu0
    %v1720 = vadd.f32 0.0, %v1719
    %1721 = vdwg.mxu0
    %1724 = vrot.lane.b32.xlu0 %v1364, 112
    %v1725 = vpop.permute.xlu0 %1724
    %1726 = vrot.lane.b32.xlu0 %v1367, 112
    %v1727 = vpop.permute.xlu0 %1726
    %v1731 = vsel %vm55, %v1683, 0
    %v1734 = vsel %vm55, %v1684, 0
    %1736 = vmatpush.msra.mxu0 0.0
    %1737 = vmatpush.msra.mxu0 0.0
    %1738 = vmatpush.msra.mxu0 0.0
    %1739 = vmatpush.msra.mxu0 0.0
    %1740 = vmatpush.msra.mxu0 0.0
    %1741 = vmatpush.msra.mxu0 0.0
    %1742 = vmatpush.msra.mxu0 0.0
    %1743 = vmatpush.msra.mxu0 0.0
    %1744 = vmatpush.msra.mxu0 0.0
    %1745 = vmatpush.msra.mxu0 0.0
    %1746 = vmatpush.msra.mxu0 0.0
    %1747 = vmatpush.msra.mxu0 0.0
    %1748 = vmatpush.msra.mxu0 0.0
    %1749 = vmatpush.msra.mxu0 0.0
    %1750 = vmatpush.msra.mxu0 %v1727
    %1751 = vmatpush.msra.mxu0 %v1725
    %1752 = vmatmul.f32.gmra.mxu0 %v1731
    %v1753 = vpop.f32.mrf.mxu0
    %v1754 = vadd.f32 0.0, %v1753
    %1755 = vmatmul.f32.gmra.mxu0 %v1734
    %v1756 = vpop.f32.mrf.mxu0
    %v1757 = vadd.f32 0.0, %v1756
    %1758 = vdwg.mxu0
    %1763 = vrot.lane.b32.xlu0 %v1717, 16
    %v1764 = vpop.permute.xlu0 %1763
    %1765 = vrot.lane.b32.xlu0 %v1720, 16
    %v1766 = vpop.permute.xlu0 %1765
    %1767 = vrot.lane.b32.xlu0 %v1754, 16
    %v1768 = vpop.permute.xlu0 %1767
    %1769 = vrot.lane.b32.xlu0 %v1757, 16
    %v1770 = vpop.permute.xlu0 %1769
    %v1775 = vsel %vm55, %v1521, %v1764
    %v1776 = vsel %vm55, %v1524, %v1766
    %v1777 = vsel %vm55, %v1550, %v1768
    %v1778 = vsel %vm55, %v1553, %v1770
    %v1779 = vld [vmem:[%s9] sm:$0xff]
    %v1780 = vld [vmem:[%s9 + $0x8] sm:$0xff]
    %v1781 = vld [vmem:[%s9 + $0x10] sm:$0xff]
    %v1782 = vld [vmem:[%s9 + $0x18] sm:$0xff]
    %v1784 = vsel %vm101, %v1775, 0
    %v1787 = vsel %vm101, %v1776, 0
    %v1790 = vsel %vm101, %v1777, 0
    %v1793 = vsel %vm101, %v1778, 0
    %1795 = vmatpush.msra.mxu0 0.0
    %1796 = vmatpush.msra.mxu0 0.0
    %1797 = vmatpush.msra.mxu0 0.0
    %1798 = vmatpush.msra.mxu0 0.0
    %1799 = vmatpush.msra.mxu0 0.0
    %1800 = vmatpush.msra.mxu0 0.0
    %1801 = vmatpush.msra.mxu0 0.0
    %1802 = vmatpush.msra.mxu0 0.0
    %1803 = vmatpush.msra.mxu0 0.0
    %1804 = vmatpush.msra.mxu0 0.0
    %1805 = vmatpush.msra.mxu0 0.0
    %1806 = vmatpush.msra.mxu0 0.0
    %1807 = vmatpush.msra.mxu0 %v1782
    %1808 = vmatpush.msra.mxu0 %v1781
    %1809 = vmatpush.msra.mxu0 %v1780
    %1810 = vmatpush.msra.mxu0 %v1779
    %1811 = vmatmul.f32.gmra.mxu0 %v1784
    %v1812 = vpop.f32.mrf.mxu0
    %v1813 = vadd.f32 0.0, %v1812
    %1814 = vmatmul.f32.gmra.mxu0 %v1787
    %v1815 = vpop.f32.mrf.mxu0
    %v1816 = vadd.f32 0.0, %v1815
    %1817 = vmatmul.f32.gmra.mxu0 %v1790
    %v1818 = vpop.f32.mrf.mxu0
    %v1819 = vadd.f32 0.0, %v1818
    %1820 = vmatmul.f32.gmra.mxu0 %v1793
    %v1821 = vpop.f32.mrf.mxu0
    %v1822 = vadd.f32 0.0, %v1821
    %1823 = vdwg.mxu0
    %v1824 = vsel %vm101, %v1813, 0.0
    %1825 = vadd.xlane.f32.xlu0 %v1824
    %v1826 = vpop.xlane.xlu0 %1825
    %v1827 = vsel %vm101, %v1816, 0.0
    %1828 = vadd.xlane.f32.xlu0 %v1827
    %v1829 = vpop.xlane.xlu0 %1828
    %v1830 = vsel %vm101, %v1819, 0.0
    %1831 = vadd.xlane.f32.xlu0 %v1830
    %v1832 = vpop.xlane.xlu0 %1831
    %v1833 = vsel %vm101, %v1822, 0.0
    %1834 = vadd.xlane.f32.xlu0 %v1833
    %v1835 = vpop.xlane.xlu0 %1834
    %v1836 = vrcp.pop 32.0
    %v1837 = vmul.f32 32.0, %v1836
    %v1838 = vsub.f32 1.0, %v1837
    %v1839 = vmul.f32 %v1836, %v1838
    %v1840 = vadd.f32 %v1836, %v1839
    %vm1841 = vweird.f32 %v1836
    %v1842 = vsel %vm1841, %v1836, %v1840
    %v1843 = vmul.f32 %v1826, %v1842
    %v1844 = vmul.f32 %v1829, %v1842
    %v1845 = vmul.f32 %v1832, %v1842
    %v1846 = vmul.f32 %v1835, %v1842
    %v1847 = vsub.f32 %v1813, %v1843
    %v1848 = vsub.f32 %v1816, %v1844
    %v1849 = vsub.f32 %v1819, %v1845
    %v1850 = vsub.f32 %v1822, %v1846
    %v1851 = vmul.f32 %v1847, %v1847
    %v1852 = vmul.f32 %v1848, %v1848
    %v1853 = vmul.f32 %v1849, %v1849
    %v1854 = vmul.f32 %v1850, %v1850
    %v1855 = vsel %vm101, %v1851, 0.0
    %1856 = vadd.xlane.f32.xlu0 %v1855
    %v1857 = vpop.xlane.xlu0 %1856
    %v1858 = vsel %vm101, %v1852, 0.0
    %1859 = vadd.xlane.f32.xlu0 %v1858
    %v1860 = vpop.xlane.xlu0 %1859
    %v1861 = vsel %vm101, %v1853, 0.0
    %1862 = vadd.xlane.f32.xlu0 %v1861
    %v1863 = vpop.xlane.xlu0 %1862
    %v1864 = vsel %vm101, %v1854, 0.0
    %1865 = vadd.xlane.f32.xlu0 %v1864
    %v1866 = vpop.xlane.xlu0 %1865
    %v1867 = vmul.f32 %v1857, %v1842
    %v1868 = vmul.f32 %v1860, %v1842
    %v1869 = vmul.f32 %v1863, %v1842
    %v1870 = vmul.f32 %v1866, %v1842
    %v1871 = vadd.f32 %v1867, 1e-05
    %v1872 = vadd.f32 %v1868, 1e-05
    %v1873 = vadd.f32 %v1869, 1e-05
    %v1874 = vadd.f32 %v1870, 1e-05
    %v1875 = vrsqrt.pop %v1871
    %v1876 = vmul.f32 %v1875, %v1871
    %v1877 = vmul.f32 %v1876, %v1875
    %v1878 = vmul.f32 0.5, %v1877
    %v1879 = vsub.f32 1.5, %v1878
    %v1880 = vmul.f32 %v1875, %v1879
    %vm1881 = vweird.f32 %v1871
    %vm1882 = vweird.f32 %v1875
    %vm1883 = vmor %vm1881, %vm1882
    %v1884 = vsel %vm1883, %v1875, %v1880
    %v1885 = vrsqrt.pop %v1872
    %v1886 = vmul.f32 %v1885, %v1872
    %v1887 = vmul.f32 %v1886, %v1885
    %v1888 = vmul.f32 0.5, %v1887
    %v1889 = vsub.f32 1.5, %v1888
    %v1890 = vmul.f32 %v1885, %v1889
    %vm1891 = vweird.f32 %v1872
    %vm1892 = vweird.f32 %v1885
    %vm1893 = vmor %vm1891, %vm1892
    %v1894 = vsel %vm1893, %v1885, %v1890
    %v1895 = vrsqrt.pop %v1873
    %v1896 = vmul.f32 %v1895, %v1873
    %v1897 = vmul.f32 %v1896, %v1895
    %v1898 = vmul.f32 0.5, %v1897
    %v1899 = vsub.f32 1.5, %v1898
    %v1900 = vmul.f32 %v1895, %v1899
    %vm1901 = vweird.f32 %v1873
    %vm1902 = vweird.f32 %v1895
    %vm1903 = vmor %vm1901, %vm1902
    %v1904 = vsel %vm1903, %v1895, %v1900
    %v1905 = vrsqrt.pop %v1874
    %v1906 = vmul.f32 %v1905, %v1874
    %v1907 = vmul.f32 %v1906, %v1905
    %v1908 = vmul.f32 0.5, %v1907
    %v1909 = vsub.f32 1.5, %v1908
    %v1910 = vmul.f32 %v1905, %v1909
    %vm1911 = vweird.f32 %v1874
    %vm1912 = vweird.f32 %v1905
    %vm1913 = vmor %vm1911, %vm1912
    %v1914 = vsel %vm1913, %v1905, %v1910
    %v1915 = vmul.f32 %v1847, %v1884
    %v1916 = vmul.f32 %v1848, %v1894
    %v1917 = vmul.f32 %v1849, %v1904
    %v1918 = vmul.f32 %v1850, %v1914
    %v1919 = vld [vmem:[%s10] sm:$0x1]
    %v1921 = vperm.slane %v1919, 0
    %v1923 = vmul.f32 %v1915, %v1921
    %v1924 = vmul.f32 %v1916, %v1921
    %v1925 = vmul.f32 %v1917, %v1921
    %v1926 = vmul.f32 %v1918, %v1921
    %v1927 = vld [vmem:[%s11] sm:$0x1]
    %v1929 = vperm.slane %v1927, 0
    %v1931 = vadd.f32 %v1923, %v1929
    %v1932 = vadd.f32 %v1924, %v1929
    %v1933 = vadd.f32 %v1925, %v1929
    %v1934 = vadd.f32 %v1926, %v1929
    %v1935 = vadd.f32 %v1254, %v1931
    %v1936 = vadd.f32 %v1255, %v1932
    %v1937 = vadd.f32 %v1256, %v1933
    %v1938 = vadd.f32 %v1257, %v1934
    %v1939 = vld [vmem:[%s12] sm:$0xff]
    %v1940 = vld [vmem:[%s12 + $0x8] sm:$0xff]
    %v1941 = vld [vmem:[%s12 + $0x10] sm:$0xff]
    %v1942 = vld [vmem:[%s12 + $0x18] sm:$0xff]
    %v1944 = vsel %vm101, %v1935, 0
    %v1947 = vsel %vm101, %v1936, 0
    %v1950 = vsel %vm101, %v1937, 0
    %v1953 = vsel %vm101, %v1938, 0
    %1955 = vmatpush.msra.mxu0 0.0
    %1956 = vmatpush.msra.mxu0 0.0
    %1957 = vmatpush.msra.mxu0 0.0
    %1958 = vmatpush.msra.mxu0 0.0
    %1959 = vmatpush.msra.mxu0 0.0
    %1960 = vmatpush.msra.mxu0 0.0
    %1961 = vmatpush.msra.mxu0 0.0
    %1962 = vmatpush.msra.mxu0 0.0
    %1963 = vmatpush.msra.mxu0 0.0
    %1964 = vmatpush.msra.mxu0 0.0
    %1965 = vmatpush.msra.mxu0 0.0
    %1966 = vmatpush.msra.mxu0 0.0
    %1967 = vmatpush.msra.mxu0 %v1942
    %1968 = vmatpush.msra.mxu0 %v1941
    %1969 = vmatpush.msra.mxu0 %v1940
    %1970 = vmatpush.msra.mxu0 %v1939
    %1971 = vmatmul.f32.gmra.mxu0 %v1944
    %v1972 = vpop.f32.mrf.mxu0
    %v1973 = vadd.f32 0.0, %v1972
    %1974 = vmatmul.f32.gmra.mxu0 %v1947
    %v1975 = vpop.f32.mrf.mxu0
    %v1976 = vadd.f32 0.0, %v1975
    %1977 = vmatmul.f32.gmra.mxu0 %v1950
    %v1978 = vpop.f32.mrf.mxu0
    %v1979 = vadd.f32 0.0, %v1978
    %1980 = vmatmul.f32.gmra.mxu0 %v1953
    %v1981 = vpop.f32.mrf.mxu0
    %v1982 = vadd.f32 0.0, %v1981
    %1983 = vdwg.mxu0
    %v1984 = vsel %vm101, %v1973, 0.0
    %v1985 = vsel %vm101, %v1976, 0.0
    %v1986 = vadd.f32 %v1984, %v1985
    %v1987 = vrot.slane %v1986, 4
    %v1988 = vadd.f32 %v1986, %v1987
    %v1989 = vrot.slane %v1988, 2
    %v1990 = vadd.f32 %v1988, %v1989
    %v1991 = vrot.slane %v1990, 1
    %v1992 = vadd.f32 %v1990, %v1991
    %v1993 = vsel %vm101, %v1979, 0.0
    %v1994 = vsel %vm101, %v1982, 0.0
    %v1995 = vadd.f32 %v1993, %v1994
    %v1996 = vrot.slane %v1995, 4
    %v1997 = vadd.f32 %v1995, %v1996
    %v1998 = vrot.slane %v1997, 2
    %v1999 = vadd.f32 %v1997, %v1998
    %v2000 = vrot.slane %v1999, 1
    %v2001 = vadd.f32 %v1999, %v2000
    %v2002 = vrcp.pop 16.0
    %v2003 = vmul.f32 16.0, %v2002
    %v2004 = vsub.f32 1.0, %v2003
    %v2005 = vmul.f32 %v2002, %v2004
    %v2006 = vadd.f32 %v2002, %v2005
    %vm2007 = vweird.f32 %v2002
    %v2008 = vsel %vm2007, %v2002, %v2006
    %v2009 = vmul.f32 %v1992, %v2008
    %v2010 = vmul.f32 %v2001, %v2008
    %vm2011 = vcmask 253952
    %2012 = vst.msk [vmem:[#allocation2] sm:$0x1] %vm2011, %v2009
    %2013 = vst.msk [vmem:[#allocation2 + $0x1] sm:$0x1] %vm2011, %v2010
    // Predicated region
    $region54: #{_mel_style_encoder_call.1} parent=1 // pred_check
      _
    $region55: #{_mel_style_encoder_call.1} parent=1 // pred_check_branch
      %2015 = sbr.rel (0) target = $region57
    $region56: #{_mel_style_encoder_call.1} parent=1 // pred_region
      %2017 = vsyncadd [#allocation3], 0
      %s2018 = sshll.u32 [#allocation2], 4
      %s2019 = int_to_ptr.vmem [resolvable:$true] %s2018
      %s2020 = sshll.u32 %s13, 4
      %s2021 = int_to_ptr.hbm [resolvable:$true] %s2020
      %2026 = dma.vmem_to_hbm [thread:$0]  %s2019, 32, %s2021, [#allocation3], 16, 16, 1
    $region57: #{_mel_style_encoder_call.1} parent=1 // pred_fallthru
      _
    // Predicated region
    $region58: #{_mel_style_encoder_call.1} parent=1 // pred_check
      _
    $region59: #{_mel_style_encoder_call.1} parent=1 // pred_check_branch
      %2028 = sbr.rel (0) target = $region61
    $region60: #{_mel_style_encoder_call.1} parent=1 // pred_region
      %2030 = dma.done [#allocation3], 32
    $region61: #{_mel_style_encoder_call.1} parent=1 // pred_fallthru
      _
    %2031 = vsyncpa [#allocation3], 1

</llo_original>
